<compile_context>
chip_gen: v7x
topology: tpu7x:2x2x1
jax: 0.10.0
libtpu: 0.0.40
codegen_flags: <defaults>
</compile_context>

<pallas_src>
import jax
import jax.numpy as jnp
from jax import lax
from jax.experimental import pallas as pl
from jax.experimental.pallas import tpu as pltpu


def sentiment_kernel(tok_ref, emb_ref, wih_ref, whh_ref, b_ref, gamma_ref, beta_ref,
                     mask_ref, wl_ref, bl_ref, y_ref,
                     loss_ref, logit_ref):
    rows = tok_ref.shape[0]                 # steps * batch (time-major)
    vocab = emb_ref.shape[0]
    batch, hidden = mask_ref.shape
    steps = rows // batch

    # ---- In-kernel embedding gather (one-hot MXU select) + hoisted input projection.
    # proj_tbl[v] = emb[v] @ w_ih, computed once; one-hot rows pick exact rows of it,
    # so xg == (emb[tokens] @ w_ih) + b bit-for-bit within f32 MXU accumulation.
    # TODO(synk): at realistic vocab sizes replace the one-hot matmul with a
    # scalar-prefetch / pl.Element row-gather (or manual DMA) of the embedding rows.
    tok = tok_ref[...]                                                # [rows, 1] int32
    col = lax.broadcasted_iota(jnp.int32, (rows, vocab), 1)
    onehot = (col == tok).astype(jnp.float32)                         # [rows, vocab]
    proj_tbl = jnp.dot(emb_ref[...], wih_ref[...],
                       preferred_element_type=jnp.float32)            # [vocab, 4H]
    xg = jnp.dot(onehot, proj_tbl,
                 preferred_element_type=jnp.float32) + b_ref[...]     # [rows, 4H]

    # ---- Serial LSTM recurrence, fully unrolled (steps is compile-time const). ----
    # Only h and c live across iterations; w_hh load is hoisted out of the loop.
    w_hh = whh_ref[...]
    h = jnp.zeros((batch, hidden), jnp.float32)
    c = jnp.zeros((batch, hidden), jnp.float32)
    hs_list = []
    for t in range(steps):
        gates = xg[t * batch:(t + 1) * batch, :] + jnp.dot(
            h, w_hh, preferred_element_type=jnp.float32)              # [batch, 4H]
        # Gates packed [i|f|g|o]; 4*hidden == 128 -> `gates` is one lane-dense vreg.
        # Apply sigmoid/tanh once to the whole vreg (2 EUP pushes), slice afterwards.
        sig = jax.nn.sigmoid(gates)
        tnh = jnp.tanh(gates)
        i_g = sig[:, 0:hidden]
        f_g = sig[:, hidden:2 * hidden]
        g_g = tnh[:, 2 * hidden:3 * hidden]
        o_g = sig[:, 3 * hidden:4 * hidden]
        c = f_g * c + i_g * g_g
        h = o_g * jnp.tanh(c)
        hs_list.append(h)                          # vreg-resident, no VMEM scratch

    # ---- Vectorized epilogue: BN(train) + LockedDropout + max-over-time. ----
    hs = jnp.stack(hs_list, axis=0)                                   # [steps, batch, hidden]
    mean = jnp.mean(hs, axis=1, keepdims=True)                        # batch stats per timestep
    xc = hs - mean                                                    # centered once, reused
    var = jnp.mean(xc * xc, axis=1, keepdims=True)
    inv = 1.0 / jnp.sqrt(var + 1e-5)               # full-precision sqrt (matches reference)
    # Fuse BN affine with the (pre-scaled) locked-dropout mask:
    # (xc*inv*gamma + beta) * mask == xc*inv*(gamma*mask) + beta*mask -> one FMA/element.
    scale = gamma_ref[...] * mask_ref[...]                            # [batch, hidden]
    shift = beta_ref[...] * mask_ref[...]                             # [batch, hidden]
    a = xc * inv * scale + shift
    pooled = jnp.max(a, axis=0)                                       # [batch, hidden]

    # ---- Linear(hidden, 1): lane-dense [1, batch] logits via w_l1 @ pooled^T. ----
    logits = lax.dot_general(
        wl_ref[...], pooled, (((1,), (1,)), ((), ())),
        preferred_element_type=jnp.float32) + bl_ref[...]             # [1, batch]
    logit_ref[...] = logits

    # ---- BCEWithLogitsLoss (mean reduction), numerically stable form. ----
    y = y_ref[...]                                                    # [1, batch]
    z = logits
    loss_per = jnp.maximum(z, 0.0) - z * y + jnp.log1p(jnp.exp(-jnp.abs(z)))
    loss_ref[...] = jnp.mean(loss_per, axis=(0, 1), keepdims=True)


def sentiment_forward(tokens, y, params, drop_mask):
    """tokens: int32 [batch, steps], y: f32 [batch]. Returns (loss, logits[batch])."""
    emb_table = params["embedding"]                 # [vocab, hidden]
    batch, steps = tokens.shape
    # Time-major token ids; only int32 ids cross the pallas_call boundary (the gather
    # itself happens inside the kernel).
    tok_tm = tokens.T.reshape(steps * batch, 1).astype(jnp.int32)

    vmem = pl.BlockSpec(memory_space=pltpu.MemorySpace.VMEM)
    loss, logits = pl.pallas_call(
        sentiment_kernel,
        out_shape=(jax.ShapeDtypeStruct((1, 1), jnp.float32),          # loss
                   jax.ShapeDtypeStruct((1, batch), jnp.float32)),     # logits (lane-dense)
        in_specs=[vmem] * 11,
        out_specs=(vmem, vmem),
    )(tok_tm, emb_table, params["w_ih"], params["w_hh"], params["b"],
      params["gamma"], params["beta"], drop_mask,
      params["w_l1"], params["b_l1"], y.reshape(1, batch).astype(jnp.float32))
    return loss[0, 0], logits[0]


def reference_forward(tokens, y, params, drop_mask):
    """Pure-JAX reference with identical semantics (for correctness check)."""
    emb = params["embedding"][tokens]                # [batch, steps, hidden]
    batch, steps, hidden = emb.shape
    h = jnp.zeros((batch, hidden), jnp.float32)
    c = jnp.zeros((batch, hidden), jnp.float32)
    outs = []
    for t in range(steps):
        g = emb[:, t, :] @ params["w_ih"] + h @ params["w_hh"] + params["b"]
        i = jax.nn.sigmoid(g[:, :hidden])
        f = jax.nn.sigmoid(g[:, hidden:2 * hidden])
        gg = jnp.tanh(g[:, 2 * hidden:3 * hidden])
        o = jax.nn.sigmoid(g[:, 3 * hidden:])
        c = f * c + i * gg
        h = o * jnp.tanh(c)
        m = h.mean(0, keepdims=True)
        v = ((h - m) ** 2).mean(0, keepdims=True)
        a = (h - m) / jnp.sqrt(v + 1e-5) * params["gamma"] + params["beta"]
        outs.append(a * drop_mask)
    pooled = jnp.max(jnp.stack(outs, 0), axis=0)
    z = (pooled * params["w_l1"]).sum(-1) + params["b_l1"][0, 0]
    loss = jnp.mean(jnp.maximum(z, 0.0) - z * y + jnp.log1p(jnp.exp(-jnp.abs(z))))
    return loss, z


if __name__ == "__main__":
    vocab_size, hidden_units = 50, 32
    batch, steps = 8, 8

    key = jax.random.PRNGKey(0)
    k_emb, k_wih, k_whh, k_b, k_wl, k_bl, k_tok, k_y, k_drop = jax.random.split(key, 9)

    bound = 1.0 / jnp.sqrt(hidden_units)
    params = {
        "embedding": jax.random.normal(k_emb, (vocab_size, hidden_units), jnp.float32),
        # LSTMCell params, stored pre-transposed: [in_dim, 4*hidden], gates [i|f|g|o].
        "w_ih": jax.random.uniform(k_wih, (hidden_units, 4 * hidden_units),
                                   jnp.float32, -bound, bound),
        "w_hh": jax.random.uniform(k_whh, (hidden_units, 4 * hidden_units),
                                   jnp.float32, -bound, bound),
        "b": jax.random.uniform(k_b, (1, 4 * hidden_units), jnp.float32, -bound, bound),
        # BatchNorm1d affine params (PyTorch defaults).
        "gamma": jnp.ones((1, hidden_units), jnp.float32),
        "beta": jnp.zeros((1, hidden_units), jnp.float32),
        # Linear(hidden, 1).
        "w_l1": jax.random.uniform(k_wl, (1, hidden_units), jnp.float32, -bound, bound),
        "b_l1": jax.random.uniform(k_bl, (1, 1), jnp.float32, -bound, bound),
    }

    tokens = jax.random.randint(k_tok, (batch, steps), 0, vocab_size, jnp.int32)
    y = jax.random.bernoulli(k_y, 0.5, (batch,)).astype(jnp.float32)

    # LockedDropout mask (train=True, p=0.5): bernoulli(1-p) / (1-p), fixed across timesteps.
    p_drop = 0.5
    drop_mask = (jax.random.bernoulli(k_drop, 1.0 - p_drop, (batch, hidden_units))
                 .astype(jnp.float32) / (1.0 - p_drop))

    loss, logits = jax.block_until_ready(
        jax.jit(sentiment_forward)(tokens, y, params, drop_mask))

    ref_loss, ref_logits = reference_forward(tokens, y, params, drop_mask)
    assert jnp.allclose(loss, ref_loss, atol=1e-4, rtol=1e-4), (loss, ref_loss)
    assert jnp.allclose(logits, ref_logits, atol=1e-4, rtol=1e-4)

    print("KERNEL_OK")
</pallas_src>

<mosaic_0001>
module attributes {stable_mosaic.version = 11 : i64} {
  func.func @sentiment_kernel(%arg0: memref<64x1xi32, #tpu.memory_space<vmem>>, %arg1: memref<50x32xf32, #tpu.memory_space<vmem>>, %arg2: memref<32x128xf32, #tpu.memory_space<vmem>>, %arg3: memref<32x128xf32, #tpu.memory_space<vmem>>, %arg4: memref<1x128xf32, #tpu.memory_space<vmem>>, %arg5: memref<1x32xf32, #tpu.memory_space<vmem>>, %arg6: memref<1x32xf32, #tpu.memory_space<vmem>>, %arg7: memref<8x32xf32, #tpu.memory_space<vmem>>, %arg8: memref<1x32xf32, #tpu.memory_space<vmem>>, %arg9: memref<1x1xf32, #tpu.memory_space<vmem>>, %arg10: memref<1x8xf32, #tpu.memory_space<vmem>>, %arg11: memref<1x1xf32, #tpu.memory_space<vmem>>, %arg12: memref<1x8xf32, #tpu.memory_space<vmem>>) attributes {dimension_semantics = [], scalar_prefetch = 0 : i64, scratch_operands = 0 : i64, tpu.core_type = #tpu.core_type<tc>} {
    %c0 = arith.constant 0 : index
    %c0_0 = arith.constant 0 : index
    %0 = vector.load %arg0[%c0, %c0_0] : memref<64x1xi32, #tpu.memory_space<vmem>>, vector<64x1xi32>
    %1 = tpu.iota {dimensions = array<i32: 1>} : vector<64x50xi32>
    %2 = vector.broadcast %0 : vector<64x1xi32> to vector<64x50xi32>
    %3 = arith.cmpi eq, %1, %2 : vector<64x50xi32>
    %4 = arith.extui %3 : vector<64x50xi1> to vector<64x50xi32>
    %5 = arith.sitofp %4 : vector<64x50xi32> to vector<64x50xf32>
    %c0_1 = arith.constant 0 : index
    %c0_2 = arith.constant 0 : index
    %6 = vector.load %arg1[%c0_1, %c0_2] : memref<50x32xf32, #tpu.memory_space<vmem>>, vector<50x32xf32>
    %c0_3 = arith.constant 0 : index
    %c0_4 = arith.constant 0 : index
    %7 = vector.load %arg2[%c0_3, %c0_4] : memref<32x128xf32, #tpu.memory_space<vmem>>, vector<32x128xf32>
    %cst = arith.constant dense<0.000000e+00> : vector<50x128xf32>
    %8 = tpu.matmul %6, %7, %cst {dimension_numbers = #tpu.dot_dimension_numbers<[1], [0], [0], [1], [0, 0, 1, 1], [], []>} : vector<50x32xf32>, vector<32x128xf32>, vector<50x128xf32> -> vector<50x128xf32>
    %cst_5 = arith.constant dense<0.000000e+00> : vector<64x128xf32>
    %9 = tpu.matmul %5, %8, %cst_5 {dimension_numbers = #tpu.dot_dimension_numbers<[1], [0], [0], [1], [0, 0, 1, 1], [], []>} : vector<64x50xf32>, vector<50x128xf32>, vector<64x128xf32> -> vector<64x128xf32>
    %c0_6 = arith.constant 0 : index
    %c0_7 = arith.constant 0 : index
    %10 = vector.load %arg4[%c0_6, %c0_7] : memref<1x128xf32, #tpu.memory_space<vmem>>, vector<1x128xf32>
    %11 = vector.broadcast %10 : vector<1x128xf32> to vector<64x128xf32>
    %12 = arith.addf %9, %11 : vector<64x128xf32>
    %c0_8 = arith.constant 0 : index
    %c0_9 = arith.constant 0 : index
    %13 = vector.load %arg3[%c0_8, %c0_9] : memref<32x128xf32, #tpu.memory_space<vmem>>, vector<32x128xf32>
    %cst_10 = arith.constant 0.000000e+00 : f32
    %14 = vector.broadcast %cst_10 : f32 to vector<8x32xf32>
    %cst_11 = arith.constant 0.000000e+00 : f32
    %15 = vector.broadcast %cst_11 : f32 to vector<8x32xf32>
    %16 = vector.extract_strided_slice %12 {offsets = [0, 0], sizes = [8, 128], strides = [1, 1]} : vector<64x128xf32> to vector<8x128xf32>
    %cst_12 = arith.constant dense<0.000000e+00> : vector<8x128xf32>
    %17 = tpu.matmul %14, %13, %cst_12 {dimension_numbers = #tpu.dot_dimension_numbers<[1], [0], [0], [1], [0, 0, 1, 1], [], []>} : vector<8x32xf32>, vector<32x128xf32>, vector<8x128xf32> -> vector<8x128xf32>
    %18 = arith.addf %16, %17 : vector<8x128xf32>
    %19 = arith.negf %18 : vector<8x128xf32>
    %20 = math.exp %19 : vector<8x128xf32>
    %cst_13 = arith.constant 1.000000e+00 : f32
    %21 = vector.broadcast %cst_13 : f32 to vector<8x128xf32>
    %22 = arith.addf %21, %20 : vector<8x128xf32>
    %23 = arith.divf %21, %22 : vector<8x128xf32>
    %24 = math.tanh %18 : vector<8x128xf32>
    %25 = vector.extract_strided_slice %23 {offsets = [0, 0], sizes = [8, 32], strides = [1, 1]} : vector<8x128xf32> to vector<8x32xf32>
    %26 = vector.extract_strided_slice %23 {offsets = [0, 32], sizes = [8, 32], strides = [1, 1]} : vector<8x128xf32> to vector<8x32xf32>
    %27 = vector.extract_strided_slice %24 {offsets = [0, 64], sizes = [8, 32], strides = [1, 1]} : vector<8x128xf32> to vector<8x32xf32>
    %28 = vector.extract_strided_slice %23 {offsets = [0, 96], sizes = [8, 32], strides = [1, 1]} : vector<8x128xf32> to vector<8x32xf32>
    %29 = arith.mulf %26, %15 : vector<8x32xf32>
    %30 = arith.mulf %25, %27 : vector<8x32xf32>
    %31 = arith.addf %29, %30 : vector<8x32xf32>
    %32 = math.tanh %31 : vector<8x32xf32>
    %33 = arith.mulf %28, %32 : vector<8x32xf32>
    %34 = vector.extract_strided_slice %12 {offsets = [8, 0], sizes = [8, 128], strides = [1, 1]} : vector<64x128xf32> to vector<8x128xf32>
    %cst_14 = arith.constant dense<0.000000e+00> : vector<8x128xf32>
    %35 = tpu.matmul %33, %13, %cst_14 {dimension_numbers = #tpu.dot_dimension_numbers<[1], [0], [0], [1], [0, 0, 1, 1], [], []>} : vector<8x32xf32>, vector<32x128xf32>, vector<8x128xf32> -> vector<8x128xf32>
    %36 = arith.addf %34, %35 : vector<8x128xf32>
    %37 = arith.negf %36 : vector<8x128xf32>
    %38 = math.exp %37 : vector<8x128xf32>
    %cst_15 = arith.constant 1.000000e+00 : f32
    %39 = vector.broadcast %cst_15 : f32 to vector<8x128xf32>
    %40 = arith.addf %39, %38 : vector<8x128xf32>
    %41 = arith.divf %39, %40 : vector<8x128xf32>
    %42 = math.tanh %36 : vector<8x128xf32>
    %43 = vector.extract_strided_slice %41 {offsets = [0, 0], sizes = [8, 32], strides = [1, 1]} : vector<8x128xf32> to vector<8x32xf32>
    %44 = vector.extract_strided_slice %41 {offsets = [0, 32], sizes = [8, 32], strides = [1, 1]} : vector<8x128xf32> to vector<8x32xf32>
    %45 = vector.extract_strided_slice %42 {offsets = [0, 64], sizes = [8, 32], strides = [1, 1]} : vector<8x128xf32> to vector<8x32xf32>
    %46 = vector.extract_strided_slice %41 {offsets = [0, 96], sizes = [8, 32], strides = [1, 1]} : vector<8x128xf32> to vector<8x32xf32>
    %47 = arith.mulf %44, %31 : vector<8x32xf32>
    %48 = arith.mulf %43, %45 : vector<8x32xf32>
    %49 = arith.addf %47, %48 : vector<8x32xf32>
    %50 = math.tanh %49 : vector<8x32xf32>
    %51 = arith.mulf %46, %50 : vector<8x32xf32>
    %52 = vector.extract_strided_slice %12 {offsets = [16, 0], sizes = [8, 128], strides = [1, 1]} : vector<64x128xf32> to vector<8x128xf32>
    %cst_16 = arith.constant dense<0.000000e+00> : vector<8x128xf32>
    %53 = tpu.matmul %51, %13, %cst_16 {dimension_numbers = #tpu.dot_dimension_numbers<[1], [0], [0], [1], [0, 0, 1, 1], [], []>} : vector<8x32xf32>, vector<32x128xf32>, vector<8x128xf32> -> vector<8x128xf32>
    %54 = arith.addf %52, %53 : vector<8x128xf32>
    %55 = arith.negf %54 : vector<8x128xf32>
    %56 = math.exp %55 : vector<8x128xf32>
    %cst_17 = arith.constant 1.000000e+00 : f32
    %57 = vector.broadcast %cst_17 : f32 to vector<8x128xf32>
    %58 = arith.addf %57, %56 : vector<8x128xf32>
    %59 = arith.divf %57, %58 : vector<8x128xf32>
    %60 = math.tanh %54 : vector<8x128xf32>
    %61 = vector.extract_strided_slice %59 {offsets = [0, 0], sizes = [8, 32], strides = [1, 1]} : vector<8x128xf32> to vector<8x32xf32>
    %62 = vector.extract_strided_slice %59 {offsets = [0, 32], sizes = [8, 32], strides = [1, 1]} : vector<8x128xf32> to vector<8x32xf32>
    %63 = vector.extract_strided_slice %60 {offsets = [0, 64], sizes = [8, 32], strides = [1, 1]} : vector<8x128xf32> to vector<8x32xf32>
    %64 = vector.extract_strided_slice %59 {offsets = [0, 96], sizes = [8, 32], strides = [1, 1]} : vector<8x128xf32> to vector<8x32xf32>
    %65 = arith.mulf %62, %49 : vector<8x32xf32>
    %66 = arith.mulf %61, %63 : vector<8x32xf32>
    %67 = arith.addf %65, %66 : vector<8x32xf32>
    %68 = math.tanh %67 : vector<8x32xf32>
    %69 = arith.mulf %64, %68 : vector<8x32xf32>
    %70 = vector.extract_strided_slice %12 {offsets = [24, 0], sizes = [8, 128], strides = [1, 1]} : vector<64x128xf32> to vector<8x128xf32>
    %cst_18 = arith.constant dense<0.000000e+00> : vector<8x128xf32>
    %71 = tpu.matmul %69, %13, %cst_18 {dimension_numbers = #tpu.dot_dimension_numbers<[1], [0], [0], [1], [0, 0, 1, 1], [], []>} : vector<8x32xf32>, vector<32x128xf32>, vector<8x128xf32> -> vector<8x128xf32>
    %72 = arith.addf %70, %71 : vector<8x128xf32>
    %73 = arith.negf %72 : vector<8x128xf32>
    %74 = math.exp %73 : vector<8x128xf32>
    %cst_19 = arith.constant 1.000000e+00 : f32
    %75 = vector.broadcast %cst_19 : f32 to vector<8x128xf32>
    %76 = arith.addf %75, %74 : vector<8x128xf32>
    %77 = arith.divf %75, %76 : vector<8x128xf32>
    %78 = math.tanh %72 : vector<8x128xf32>
    %79 = vector.extract_strided_slice %77 {offsets = [0, 0], sizes = [8, 32], strides = [1, 1]} : vector<8x128xf32> to vector<8x32xf32>
    %80 = vector.extract_strided_slice %77 {offsets = [0, 32], sizes = [8, 32], strides = [1, 1]} : vector<8x128xf32> to vector<8x32xf32>
    %81 = vector.extract_strided_slice %78 {offsets = [0, 64], sizes = [8, 32], strides = [1, 1]} : vector<8x128xf32> to vector<8x32xf32>
    %82 = vector.extract_strided_slice %77 {offsets = [0, 96], sizes = [8, 32], strides = [1, 1]} : vector<8x128xf32> to vector<8x32xf32>
    %83 = arith.mulf %80, %67 : vector<8x32xf32>
    %84 = arith.mulf %79, %81 : vector<8x32xf32>
    %85 = arith.addf %83, %84 : vector<8x32xf32>
    %86 = math.tanh %85 : vector<8x32xf32>
    %87 = arith.mulf %82, %86 : vector<8x32xf32>
    %88 = vector.extract_strided_slice %12 {offsets = [32, 0], sizes = [8, 128], strides = [1, 1]} : vector<64x128xf32> to vector<8x128xf32>
    %cst_20 = arith.constant dense<0.000000e+00> : vector<8x128xf32>
    %89 = tpu.matmul %87, %13, %cst_20 {dimension_numbers = #tpu.dot_dimension_numbers<[1], [0], [0], [1], [0, 0, 1, 1], [], []>} : vector<8x32xf32>, vector<32x128xf32>, vector<8x128xf32> -> vector<8x128xf32>
    %90 = arith.addf %88, %89 : vector<8x128xf32>
    %91 = arith.negf %90 : vector<8x128xf32>
    %92 = math.exp %91 : vector<8x128xf32>
    %cst_21 = arith.constant 1.000000e+00 : f32
    %93 = vector.broadcast %cst_21 : f32 to vector<8x128xf32>
    %94 = arith.addf %93, %92 : vector<8x128xf32>
    %95 = arith.divf %93, %94 : vector<8x128xf32>
    %96 = math.tanh %90 : vector<8x128xf32>
    %97 = vector.extract_strided_slice %95 {offsets = [0, 0], sizes = [8, 32], strides = [1, 1]} : vector<8x128xf32> to vector<8x32xf32>
    %98 = vector.extract_strided_slice %95 {offsets = [0, 32], sizes = [8, 32], strides = [1, 1]} : vector<8x128xf32> to vector<8x32xf32>
    %99 = vector.extract_strided_slice %96 {offsets = [0, 64], sizes = [8, 32], strides = [1, 1]} : vector<8x128xf32> to vector<8x32xf32>
    %100 = vector.extract_strided_slice %95 {offsets = [0, 96], sizes = [8, 32], strides = [1, 1]} : vector<8x128xf32> to vector<8x32xf32>
    %101 = arith.mulf %98, %85 : vector<8x32xf32>
    %102 = arith.mulf %97, %99 : vector<8x32xf32>
    %103 = arith.addf %101, %102 : vector<8x32xf32>
    %104 = math.tanh %103 : vector<8x32xf32>
    %105 = arith.mulf %100, %104 : vector<8x32xf32>
    %106 = vector.extract_strided_slice %12 {offsets = [40, 0], sizes = [8, 128], strides = [1, 1]} : vector<64x128xf32> to vector<8x128xf32>
    %cst_22 = arith.constant dense<0.000000e+00> : vector<8x128xf32>
    %107 = tpu.matmul %105, %13, %cst_22 {dimension_numbers = #tpu.dot_dimension_numbers<[1], [0], [0], [1], [0, 0, 1, 1], [], []>} : vector<8x32xf32>, vector<32x128xf32>, vector<8x128xf32> -> vector<8x128xf32>
    %108 = arith.addf %106, %107 : vector<8x128xf32>
    %109 = arith.negf %108 : vector<8x128xf32>
    %110 = math.exp %109 : vector<8x128xf32>
    %cst_23 = arith.constant 1.000000e+00 : f32
    %111 = vector.broadcast %cst_23 : f32 to vector<8x128xf32>
    %112 = arith.addf %111, %110 : vector<8x128xf32>
    %113 = arith.divf %111, %112 : vector<8x128xf32>
    %114 = math.tanh %108 : vector<8x128xf32>
    %115 = vector.extract_strided_slice %113 {offsets = [0, 0], sizes = [8, 32], strides = [1, 1]} : vector<8x128xf32> to vector<8x32xf32>
    %116 = vector.extract_strided_slice %113 {offsets = [0, 32], sizes = [8, 32], strides = [1, 1]} : vector<8x128xf32> to vector<8x32xf32>
    %117 = vector.extract_strided_slice %114 {offsets = [0, 64], sizes = [8, 32], strides = [1, 1]} : vector<8x128xf32> to vector<8x32xf32>
    %118 = vector.extract_strided_slice %113 {offsets = [0, 96], sizes = [8, 32], strides = [1, 1]} : vector<8x128xf32> to vector<8x32xf32>
    %119 = arith.mulf %116, %103 : vector<8x32xf32>
    %120 = arith.mulf %115, %117 : vector<8x32xf32>
    %121 = arith.addf %119, %120 : vector<8x32xf32>
    %122 = math.tanh %121 : vector<8x32xf32>
    %123 = arith.mulf %118, %122 : vector<8x32xf32>
    %124 = vector.extract_strided_slice %12 {offsets = [48, 0], sizes = [8, 128], strides = [1, 1]} : vector<64x128xf32> to vector<8x128xf32>
    %cst_24 = arith.constant dense<0.000000e+00> : vector<8x128xf32>
    %125 = tpu.matmul %123, %13, %cst_24 {dimension_numbers = #tpu.dot_dimension_numbers<[1], [0], [0], [1], [0, 0, 1, 1], [], []>} : vector<8x32xf32>, vector<32x128xf32>, vector<8x128xf32> -> vector<8x128xf32>
    %126 = arith.addf %124, %125 : vector<8x128xf32>
    %127 = arith.negf %126 : vector<8x128xf32>
    %128 = math.exp %127 : vector<8x128xf32>
    %cst_25 = arith.constant 1.000000e+00 : f32
    %129 = vector.broadcast %cst_25 : f32 to vector<8x128xf32>
    %130 = arith.addf %129, %128 : vector<8x128xf32>
    %131 = arith.divf %129, %130 : vector<8x128xf32>
    %132 = math.tanh %126 : vector<8x128xf32>
    %133 = vector.extract_strided_slice %131 {offsets = [0, 0], sizes = [8, 32], strides = [1, 1]} : vector<8x128xf32> to vector<8x32xf32>
    %134 = vector.extract_strided_slice %131 {offsets = [0, 32], sizes = [8, 32], strides = [1, 1]} : vector<8x128xf32> to vector<8x32xf32>
    %135 = vector.extract_strided_slice %132 {offsets = [0, 64], sizes = [8, 32], strides = [1, 1]} : vector<8x128xf32> to vector<8x32xf32>
    %136 = vector.extract_strided_slice %131 {offsets = [0, 96], sizes = [8, 32], strides = [1, 1]} : vector<8x128xf32> to vector<8x32xf32>
    %137 = arith.mulf %134, %121 : vector<8x32xf32>
    %138 = arith.mulf %133, %135 : vector<8x32xf32>
    %139 = arith.addf %137, %138 : vector<8x32xf32>
    %140 = math.tanh %139 : vector<8x32xf32>
    %141 = arith.mulf %136, %140 : vector<8x32xf32>
    %142 = vector.extract_strided_slice %12 {offsets = [56, 0], sizes = [8, 128], strides = [1, 1]} : vector<64x128xf32> to vector<8x128xf32>
    %cst_26 = arith.constant dense<0.000000e+00> : vector<8x128xf32>
    %143 = tpu.matmul %141, %13, %cst_26 {dimension_numbers = #tpu.dot_dimension_numbers<[1], [0], [0], [1], [0, 0, 1, 1], [], []>} : vector<8x32xf32>, vector<32x128xf32>, vector<8x128xf32> -> vector<8x128xf32>
    %144 = arith.addf %142, %143 : vector<8x128xf32>
    %145 = arith.negf %144 : vector<8x128xf32>
    %146 = math.exp %145 : vector<8x128xf32>
    %cst_27 = arith.constant 1.000000e+00 : f32
    %147 = vector.broadcast %cst_27 : f32 to vector<8x128xf32>
    %148 = arith.addf %147, %146 : vector<8x128xf32>
    %149 = arith.divf %147, %148 : vector<8x128xf32>
    %150 = math.tanh %144 : vector<8x128xf32>
    %151 = vector.extract_strided_slice %149 {offsets = [0, 0], sizes = [8, 32], strides = [1, 1]} : vector<8x128xf32> to vector<8x32xf32>
    %152 = vector.extract_strided_slice %149 {offsets = [0, 32], sizes = [8, 32], strides = [1, 1]} : vector<8x128xf32> to vector<8x32xf32>
    %153 = vector.extract_strided_slice %150 {offsets = [0, 64], sizes = [8, 32], strides = [1, 1]} : vector<8x128xf32> to vector<8x32xf32>
    %154 = vector.extract_strided_slice %149 {offsets = [0, 96], sizes = [8, 32], strides = [1, 1]} : vector<8x128xf32> to vector<8x32xf32>
    %155 = arith.mulf %152, %139 : vector<8x32xf32>
    %156 = arith.mulf %151, %153 : vector<8x32xf32>
    %157 = arith.addf %155, %156 : vector<8x32xf32>
    %158 = math.tanh %157 : vector<8x32xf32>
    %159 = arith.mulf %154, %158 : vector<8x32xf32>
    %160 = vector.shape_cast %33 : vector<8x32xf32> to vector<1x8x32xf32>
    %161 = vector.shape_cast %51 : vector<8x32xf32> to vector<1x8x32xf32>
    %162 = vector.shape_cast %69 : vector<8x32xf32> to vector<1x8x32xf32>
    %163 = vector.shape_cast %87 : vector<8x32xf32> to vector<1x8x32xf32>
    %164 = vector.shape_cast %105 : vector<8x32xf32> to vector<1x8x32xf32>
    %165 = vector.shape_cast %123 : vector<8x32xf32> to vector<1x8x32xf32>
    %166 = vector.shape_cast %141 : vector<8x32xf32> to vector<1x8x32xf32>
    %167 = vector.shape_cast %159 : vector<8x32xf32> to vector<1x8x32xf32>
    %168 = tpu.concatenate %160, %161, %162, %163, %164, %165, %166, %167 in 0 : vector<1x8x32xf32>, vector<1x8x32xf32>, vector<1x8x32xf32>, vector<1x8x32xf32>, vector<1x8x32xf32>, vector<1x8x32xf32>, vector<1x8x32xf32>, vector<1x8x32xf32> -> vector<8x8x32xf32>
    %cst_28 = arith.constant dense<0.000000e+00> : vector<8x32xf32>
    %169 = vector.multi_reduction <add>, %168, %cst_28 [1] : vector<8x8x32xf32> to vector<8x32xf32>
    %170 = vector.shape_cast %169 : vector<8x32xf32> to vector<8x1x32xf32>
    %cst_29 = arith.constant 8.000000e+00 : f32
    %171 = vector.broadcast %cst_29 : f32 to vector<8x1x32xf32>
    %172 = arith.divf %170, %171 : vector<8x1x32xf32>
    %173 = vector.broadcast %172 : vector<8x1x32xf32> to vector<8x8x32xf32>
    %174 = arith.subf %168, %173 : vector<8x8x32xf32>
    %175 = arith.mulf %174, %174 : vector<8x8x32xf32>
    %cst_30 = arith.constant dense<0.000000e+00> : vector<8x32xf32>
    %176 = vector.multi_reduction <add>, %175, %cst_30 [1] : vector<8x8x32xf32> to vector<8x32xf32>
    %177 = vector.shape_cast %176 : vector<8x32xf32> to vector<8x1x32xf32>
    %cst_31 = arith.constant 8.000000e+00 : f32
    %178 = vector.broadcast %cst_31 : f32 to vector<8x1x32xf32>
    %179 = arith.divf %177, %178 : vector<8x1x32xf32>
    %cst_32 = arith.constant 9.99999974E-6 : f32
    %180 = vector.broadcast %cst_32 : f32 to vector<8x1x32xf32>
    %181 = arith.addf %179, %180 : vector<8x1x32xf32>
    %182 = math.sqrt %181 : vector<8x1x32xf32>
    %cst_33 = arith.constant 1.000000e+00 : f32
    %183 = vector.broadcast %cst_33 : f32 to vector<8x1x32xf32>
    %184 = arith.divf %183, %182 : vector<8x1x32xf32>
    %c0_34 = arith.constant 0 : index
    %c0_35 = arith.constant 0 : index
    %185 = vector.load %arg5[%c0_34, %c0_35] : memref<1x32xf32, #tpu.memory_space<vmem>>, vector<1x32xf32>
    %c0_36 = arith.constant 0 : index
    %c0_37 = arith.constant 0 : index
    %186 = vector.load %arg7[%c0_36, %c0_37] : memref<8x32xf32, #tpu.memory_space<vmem>>, vector<8x32xf32>
    %187 = vector.broadcast %185 : vector<1x32xf32> to vector<8x32xf32>
    %188 = arith.mulf %187, %186 : vector<8x32xf32>
    %c0_38 = arith.constant 0 : index
    %c0_39 = arith.constant 0 : index
    %189 = vector.load %arg6[%c0_38, %c0_39] : memref<1x32xf32, #tpu.memory_space<vmem>>, vector<1x32xf32>
    %c0_40 = arith.constant 0 : index
    %c0_41 = arith.constant 0 : index
    %190 = vector.load %arg7[%c0_40, %c0_41] : memref<8x32xf32, #tpu.memory_space<vmem>>, vector<8x32xf32>
    %191 = vector.broadcast %189 : vector<1x32xf32> to vector<8x32xf32>
    %192 = arith.mulf %191, %190 : vector<8x32xf32>
    %193 = vector.broadcast %184 : vector<8x1x32xf32> to vector<8x8x32xf32>
    %194 = arith.mulf %174, %193 : vector<8x8x32xf32>
    %195 = vector.shape_cast %188 : vector<8x32xf32> to vector<1x8x32xf32>
    %196 = vector.broadcast %195 : vector<1x8x32xf32> to vector<8x8x32xf32>
    %197 = arith.mulf %194, %196 : vector<8x8x32xf32>
    %198 = vector.shape_cast %192 : vector<8x32xf32> to vector<1x8x32xf32>
    %199 = vector.broadcast %198 : vector<1x8x32xf32> to vector<8x8x32xf32>
    %200 = arith.addf %197, %199 : vector<8x8x32xf32>
    %cst_42 = arith.constant dense<0xFF800000> : vector<8x32xf32>
    %201 = vector.multi_reduction <maximumf>, %200, %cst_42 [0] : vector<8x8x32xf32> to vector<8x32xf32>
    %c0_43 = arith.constant 0 : index
    %c0_44 = arith.constant 0 : index
    %202 = vector.load %arg8[%c0_43, %c0_44] : memref<1x32xf32, #tpu.memory_space<vmem>>, vector<1x32xf32>
    %cst_45 = arith.constant dense<0.000000e+00> : vector<1x8xf32>
    %203 = tpu.matmul %202, %201, %cst_45 {dimension_numbers = #tpu.dot_dimension_numbers<[1], [1], [0], [0], [0, 0, 1, 0], [], []>} : vector<1x32xf32>, vector<8x32xf32>, vector<1x8xf32> -> vector<1x8xf32>
    %c0_46 = arith.constant 0 : index
    %c0_47 = arith.constant 0 : index
    %204 = vector.load %arg9[%c0_46, %c0_47] : memref<1x1xf32, #tpu.memory_space<vmem>>, vector<1x1xf32>
    %205 = vector.broadcast %204 : vector<1x1xf32> to vector<1x8xf32>
    %206 = arith.addf %203, %205 : vector<1x8xf32>
    %c0_48 = arith.constant 0 : index
    %c0_49 = arith.constant 0 : index
    %207 = vector.load %arg12[%c0_48, %c0_49] : memref<1x8xf32, #tpu.memory_space<vmem>>, vector<1x8xf32>
    tpu.vector_store %arg12[%c0_48, %c0_49], %206 {strides = array<i32>} : memref<1x8xf32, #tpu.memory_space<vmem>>, vector<1x8xf32>,
    %c0_50 = arith.constant 0 : index
    %c0_51 = arith.constant 0 : index
    %208 = vector.load %arg10[%c0_50, %c0_51] : memref<1x8xf32, #tpu.memory_space<vmem>>, vector<1x8xf32>
    %cst_52 = arith.constant 0.000000e+00 : f32
    %209 = vector.broadcast %cst_52 : f32 to vector<1x8xf32>
    %210 = arith.maximumf %206, %209 : vector<1x8xf32>
    %211 = arith.mulf %206, %208 : vector<1x8xf32>
    %212 = arith.subf %210, %211 : vector<1x8xf32>
    %213 = math.absf %206 : vector<1x8xf32>
    %cst_53 = arith.constant 0.000000e+00 : f32
    %214 = vector.broadcast %cst_53 : f32 to vector<1x8xf32>
    %215 = arith.subf %214, %213 : vector<1x8xf32>
    %216 = math.exp %215 : vector<1x8xf32>
    %217 = math.log1p %216 : vector<1x8xf32>
    %218 = arith.addf %212, %217 : vector<1x8xf32>
    %219 = vector.shape_cast %218 : vector<1x8xf32> to vector<1x1x8xf32>
    %cst_54 = arith.constant dense<0.000000e+00> : vector<1xf32>
    %220 = vector.multi_reduction <add>, %219, %cst_54 [1, 2] : vector<1x1x8xf32> to vector<1xf32>
    %221 = vector.shape_cast %220 : vector<1xf32> to vector<1x1x1xf32>
    %222 = vector.extract %221[0, 0, 0] : f32 from vector<1x1x1xf32>
    %223 = vector.broadcast %222 : f32 to vector<1x1xf32>
    %cst_55 = arith.constant 8.000000e+00 : f32
    %224 = vector.broadcast %cst_55 : f32 to vector<1x1xf32>
    %225 = arith.divf %223, %224 : vector<1x1xf32>
    %c0_56 = arith.constant 0 : index
    %c0_57 = arith.constant 0 : index
    %226 = vector.load %arg11[%c0_56, %c0_57] : memref<1x1xf32, #tpu.memory_space<vmem>>, vector<1x1xf32>
    tpu.vector_store %arg11[%c0_56, %c0_57], %225 {strides = array<i32>} : memref<1x1xf32, #tpu.memory_space<vmem>>, vector<1x1xf32>,
    return
  }
}

</mosaic_0001>

<llo_original>
// kernel: sentiment_forward.1
$region0: #{sentiment_forward.1}
  #allocation0 [shape = 'u32[]', space=smem, size = 0x4, offset = 0x4, fixed_abs, tag = 'smem constant byte address 0x4 - core index']
  #allocation1 [shape = 'u32[144,128]{1,0:T(1,128)}', space=vmem, size = 0x12000, scoped, tag = 'internal scratch']
  #allocation2 [shape = 'f32[1,1]{1,0:T(1,128)S(1)}', space=vmem, size = 0x200, scoped, tag = 'scoped memory for sentiment_forward.1']
  %s0 = inlined_call_operand.vmem [shape: s32[64,1], index: 0, kind: input, shape index: {}]
  %s1 = inlined_call_operand.vmem [shape: f32[50,32], index: 1, kind: input, shape index: {}]
  %s2 = inlined_call_operand.vmem [shape: f32[32,128], index: 2, kind: input, shape index: {}]
  %s3 = inlined_call_operand.vmem [shape: f32[32,128], index: 3, kind: input, shape index: {}]
  %s4 = inlined_call_operand.vmem [shape: f32[1,128], index: 4, kind: input, shape index: {}]
  %s5 = inlined_call_operand.vmem [shape: f32[1,32], index: 5, kind: input, shape index: {}]
  %s6 = inlined_call_operand.vmem [shape: f32[1,32], index: 6, kind: input, shape index: {}]
  %s7 = inlined_call_operand.vmem [shape: f32[8,32], index: 7, kind: input, shape index: {}]
  %s8 = inlined_call_operand.vmem [shape: f32[1,32], index: 8, kind: input, shape index: {}]
  %s9 = inlined_call_operand.<no memory space> [shape: f32[1,1], index: 9, kind: input, shape index: {}]
  %s10 = inlined_call_operand.vmem [shape: f32[1,8], index: 10, kind: input, shape index: {}]
  %s11 = inlined_call_operand.hbm [shape: f32[1,1], index: 11, kind: output, shape index: {0}]
  %s12 = inlined_call_operand.hbm [shape: f32[1,8], index: 12, kind: output, shape index: {1}]
  %13 = xla_tuple %s11, %s12
  %s14 = sld [smem:[#allocation0]]
  $region62: #{sentiment_forward.1} parent=0
    _
  %s16 = ssub.s32 1, %s14
  %s17 = scalar_select 0, %s16, %s14
  %v18 = vstv %s9
  %19 = vst [vmem:[#allocation2] sm:$0x1] %v18
  $region1: #{sentiment_forward.1} parent=0
    #allocation3 [shape = 'u8[512]{0}', space=vmem, size = 0x400, scoped, tag = 'output window, operand 0, single buffered']
    #allocation4 [shape = 's32[1]{0}', space=sflag, size = 0x4, scoped, tag = 'scoped memory for sentiment_forward.1']
    #allocation5 [shape = 'u8[512]{0}', space=vmem, size = 0x400, scoped, tag = 'output window, operand 1, single buffered']
    #allocation6 [shape = 's32[1]{0}', space=sflag, size = 0x4, scoped, tag = 'scoped memory for sentiment_forward.1']
    %20 = vsyncpa [#allocation4], 0
    %21 = vsyncpa [#allocation6], 0
    // Predicated region
    $region2: #{sentiment_forward.1} parent=1 // pred_check
      _
    $region3: #{sentiment_forward.1} parent=1 // pred_check_branch
      %23 = sbr.rel (0) target = $region5
    $region4: #{sentiment_forward.1} parent=1 // pred_region
      _
    $region5: #{sentiment_forward.1} parent=1 // pred_fallthru
      _
    // Predicated region
    $region6: #{sentiment_forward.1} parent=1 // pred_check
      _
    $region7: #{sentiment_forward.1} parent=1 // pred_check_branch
      %25 = sbr.rel (0) target = $region9
    $region8: #{sentiment_forward.1} parent=1 // pred_region
      _
    $region9: #{sentiment_forward.1} parent=1 // pred_fallthru
      _
    // Predicated region
    $region10: #{sentiment_forward.1} parent=1 // pred_check
      _
    $region11: #{sentiment_forward.1} parent=1 // pred_check_branch
      %27 = sbr.rel (0) target = $region13
    $region12: #{sentiment_forward.1} parent=1 // pred_region
      _
    $region13: #{sentiment_forward.1} parent=1 // pred_fallthru
      _
    // Predicated region
    $region14: #{sentiment_forward.1} parent=1 // pred_check
      _
    $region15: #{sentiment_forward.1} parent=1 // pred_check_branch
      %29 = sbr.rel (0) target = $region17
    $region16: #{sentiment_forward.1} parent=1 // pred_region
      _
    $region17: #{sentiment_forward.1} parent=1 // pred_fallthru
      _
    // Predicated region
    $region18: #{sentiment_forward.1} parent=1 // pred_check
      _
    $region19: #{sentiment_forward.1} parent=1 // pred_check_branch
      %31 = sbr.rel (0) target = $region21
    $region20: #{sentiment_forward.1} parent=1 // pred_region
      _
    $region21: #{sentiment_forward.1} parent=1 // pred_fallthru
      _
    // Predicated region
    $region22: #{sentiment_forward.1} parent=1 // pred_check
      _
    $region23: #{sentiment_forward.1} parent=1 // pred_check_branch
      %33 = sbr.rel (0) target = $region25
    $region24: #{sentiment_forward.1} parent=1 // pred_region
      _
    $region25: #{sentiment_forward.1} parent=1 // pred_fallthru
      _
    // Predicated region
    $region26: #{sentiment_forward.1} parent=1 // pred_check
      _
    $region27: #{sentiment_forward.1} parent=1 // pred_check_branch
      %35 = sbr.rel (0) target = $region29
    $region28: #{sentiment_forward.1} parent=1 // pred_region
      _
    $region29: #{sentiment_forward.1} parent=1 // pred_fallthru
      _
    // Predicated region
    $region30: #{sentiment_forward.1} parent=1 // pred_check
      _
    $region31: #{sentiment_forward.1} parent=1 // pred_check_branch
      %37 = sbr.rel (0) target = $region33
    $region32: #{sentiment_forward.1} parent=1 // pred_region
      _
    $region33: #{sentiment_forward.1} parent=1 // pred_fallthru
      _
    // Predicated region
    $region34: #{sentiment_forward.1} parent=1 // pred_check
      _
    $region35: #{sentiment_forward.1} parent=1 // pred_check_branch
      %39 = sbr.rel (0) target = $region37
    $region36: #{sentiment_forward.1} parent=1 // pred_region
      _
    $region37: #{sentiment_forward.1} parent=1 // pred_fallthru
      _
    // Predicated region
    $region38: #{sentiment_forward.1} parent=1 // pred_check
      _
    $region39: #{sentiment_forward.1} parent=1 // pred_check_branch
      %41 = sbr.rel (0) target = $region41
    $region40: #{sentiment_forward.1} parent=1 // pred_region
      _
    $region41: #{sentiment_forward.1} parent=1 // pred_fallthru
      _
    // Predicated region
    $region42: #{sentiment_forward.1} parent=1 // pred_check
      _
    $region43: #{sentiment_forward.1} parent=1 // pred_check_branch
      %43 = sbr.rel (0) target = $region45
    $region44: #{sentiment_forward.1} parent=1 // pred_region
      _
    $region45: #{sentiment_forward.1} parent=1 // pred_fallthru
      _
    %v44 = vld [vmem:[%s0] sm:$0xff]
    %v45 = vld [vmem:[%s0 + $0x8] sm:$0xff]
    %v46 = vld [vmem:[%s0 + $0x10] sm:$0xff]
    %v47 = vld [vmem:[%s0 + $0x18] sm:$0xff]
    %v48 = vld [vmem:[%s0 + $0x20] sm:$0xff]
    %v49 = vld [vmem:[%s0 + $0x28] sm:$0xff]
    %v50 = vld [vmem:[%s0 + $0x30] sm:$0xff]
    %v51 = vld [vmem:[%s0 + $0x38] sm:$0xff]
    %v52 = vlaneseq
    %v53 = vand.u32 %v52, 127
    %54 = vset.pattern.permute.xlu0 0
    %55 = vperm.xlu0 %54, %v44
    %v56 = vpop.permute.xlu0 %55
    %57 = vset.pattern.permute.xlu0 0
    %58 = vperm.xlu0 %57, %v45
    %v59 = vpop.permute.xlu0 %58
    %60 = vset.pattern.permute.xlu0 0
    %61 = vperm.xlu0 %60, %v46
    %v62 = vpop.permute.xlu0 %61
    %63 = vset.pattern.permute.xlu0 0
    %64 = vperm.xlu0 %63, %v47
    %v65 = vpop.permute.xlu0 %64
    %66 = vset.pattern.permute.xlu0 0
    %67 = vperm.xlu0 %66, %v48
    %v68 = vpop.permute.xlu0 %67
    %69 = vset.pattern.permute.xlu0 0
    %70 = vperm.xlu0 %69, %v49
    %v71 = vpop.permute.xlu0 %70
    %72 = vset.pattern.permute.xlu0 0
    %73 = vperm.xlu0 %72, %v50
    %v74 = vpop.permute.xlu0 %73
    %75 = vset.pattern.permute.xlu0 0
    %76 = vperm.xlu0 %75, %v51
    %v77 = vpop.permute.xlu0 %76
    %vm78 = vcmp.eq.s32.totalorder %v53, %v56
    %vm79 = vcmp.eq.s32.totalorder %v53, %v59
    %vm80 = vcmp.eq.s32.totalorder %v53, %v62
    %vm81 = vcmp.eq.s32.totalorder %v53, %v65
    %vm82 = vcmp.eq.s32.totalorder %v53, %v68
    %vm83 = vcmp.eq.s32.totalorder %v53, %v71
    %vm84 = vcmp.eq.s32.totalorder %v53, %v74
    %vm85 = vcmp.eq.s32.totalorder %v53, %v77
    %v86 = vsel %vm78, 1, 0
    %v87 = vsel %vm79, 1, 0
    %v88 = vsel %vm80, 1, 0
    %v89 = vsel %vm81, 1, 0
    %v90 = vsel %vm82, 1, 0
    %v91 = vsel %vm83, 1, 0
    %v92 = vsel %vm84, 1, 0
    %v93 = vsel %vm85, 1, 0
    %v94 = vcvt.s32.f32 %v86
    %v95 = vcvt.s32.f32 %v87
    %v96 = vcvt.s32.f32 %v88
    %v97 = vcvt.s32.f32 %v89
    %v98 = vcvt.s32.f32 %v90
    %v99 = vcvt.s32.f32 %v91
    %v100 = vcvt.s32.f32 %v92
    %v101 = vcvt.s32.f32 %v93
    %v102 = vld [vmem:[%s1] sm:$0xff]
    %v103 = vld [vmem:[%s1 + $0x8] sm:$0xff]
    %v104 = vld [vmem:[%s1 + $0x10] sm:$0xff]
    %v105 = vld [vmem:[%s1 + $0x18] sm:$0xff]
    %v106 = vld [vmem:[%s1 + $0x20] sm:$0xff]
    %v107 = vld [vmem:[%s1 + $0x28] sm:$0xff]
    %v108 = vld [vmem:[%s1 + $0x30] sm:$0x3]
    %v109 = vld [vmem:[%s2] sm:$0xff]
    %v110 = vld [vmem:[%s2 + $0x8] sm:$0xff]
    %v111 = vld [vmem:[%s2 + $0x10] sm:$0xff]
    %v112 = vld [vmem:[%s2 + $0x18] sm:$0xff]
    %vm113 = vcmask 261120
    %v115 = vsel %vm113, %v102, 0
    %v118 = vsel %vm113, %v103, 0
    %v121 = vsel %vm113, %v104, 0
    %v124 = vsel %vm113, %v105, 0
    %v127 = vsel %vm113, %v106, 0
    %v130 = vsel %vm113, %v107, 0
    %v133 = vsel %vm113, %v108, 0
    %135 = vmatprep.subr.mxu0 0.0
    %136 = vmatpush1.msra.mxu0 %v109
    %137 = vmatprep.subr.mxu0 0.0
    %138 = vmatpush1.msra.mxu0 %v110
    %139 = vmatprep.subr.mxu0 0.0
    %140 = vmatpush1.msra.mxu0 %v111
    %141 = vmatprep.subr.mxu0 0.0
    %142 = vmatpush1.msra.mxu0 %v112
    %143 = vmatprep.subr.mxu0 0.0
    %144 = vmatpush1.msra.mxu0 0.0
    %145 = vmatprep.subr.mxu0 0.0
    %146 = vmatpush1.msra.mxu0 0.0
    %147 = vmatprep.subr.mxu0 0.0
    %148 = vmatpush1.msra.mxu0 0.0
    %149 = vmatprep.subr.mxu0 0.0
    %150 = vmatpush1.msra.mxu0 0.0
    %151 = vmatprep.subr.mxu0 0.0
    %152 = vmatpush1.msra.mxu0 0.0
    %153 = vmatprep.subr.mxu0 0.0
    %154 = vmatpush1.msra.mxu0 0.0
    %155 = vmatprep.subr.mxu0 0.0
    %156 = vmatpush1.msra.mxu0 0.0
    %157 = vmatprep.subr.mxu0 0.0
    %158 = vmatpush1.msra.mxu0 0.0
    %159 = vmatprep.subr.mxu0 0.0
    %160 = vmatpush1.msra.mxu0 0.0
    %161 = vmatprep.subr.mxu0 0.0
    %162 = vmatpush1.msra.mxu0 0.0
    %163 = vmatprep.subr.mxu0 0.0
    %164 = vmatpush1.msra.mxu0 0.0
    %165 = vmatprep.subr.mxu0 0.0
    %166 = vmatpush1.msra.mxu0 0.0
    %167 = vmatprep.subr.mxu0 0.0
    %168 = vmatpush1.msra.mxu0 0.0
    %169 = vmatprep.subr.mxu0 0.0
    %170 = vmatpush1.msra.mxu0 0.0
    %171 = vmatprep.subr.mxu0 0.0
    %172 = vmatpush1.msra.mxu0 0.0
    %173 = vmatprep.subr.mxu0 0.0
    %174 = vmatpush1.msra.mxu0 0.0
    %175 = vmatprep.subr.mxu0 0.0
    %176 = vmatpush1.msra.mxu0 0.0
    %177 = vmatprep.subr.mxu0 0.0
    %178 = vmatpush1.msra.mxu0 0.0
    %179 = vmatprep.subr.mxu0 0.0
    %180 = vmatpush1.msra.mxu0 0.0
    %181 = vmatprep.subr.mxu0 0.0
    %182 = vmatpush1.msra.mxu0 0.0
    %183 = vmatprep.subr.mxu0 0.0
    %184 = vmatpush1.msra.mxu0 0.0
    %185 = vmatprep.subr.mxu0 0.0
    %186 = vmatpush1.msra.mxu0 0.0
    %187 = vmatprep.subr.mxu0 0.0
    %188 = vmatpush1.msra.mxu0 0.0
    %189 = vmatprep.subr.mxu0 0.0
    %190 = vmatpush1.msra.mxu0 0.0
    %191 = vmatprep.subr.mxu0 0.0
    %192 = vmatpush1.msra.mxu0 0.0
    %193 = vmatprep.subr.mxu0 0.0
    %194 = vmatpush1.msra.mxu0 0.0
    %195 = vmatprep.subr.mxu0 0.0
    %196 = vmatpush1.msra.mxu0 0.0
    %197 = vmatprep.subr.mxu0 0.0
    %198 = vmatpush1.msra.mxu0 0.0
    %199 = vmatprep.mubr.f32.mxu0 0.0
    %200 = vmatmul.mubr.f32.gmra.mrb[0].mxu0 %v115
    %v201 = vpop.f32.mrb[0].mxu0
    %v202 = vadd.f32 0.0, %v201
    %v203 = vpop.f32.mrb[0].mxu0
    %204 = vmatprep.mubr.f32.mxu0 0.0
    %205 = vmatmul.mubr.f32.gmra.mrb[0].mxu0 %v118
    %v206 = vpop.f32.mrb[0].mxu0
    %v207 = vadd.f32 0.0, %v206
    %v208 = vpop.f32.mrb[0].mxu0
    %209 = vmatprep.mubr.f32.mxu0 0.0
    %210 = vmatmul.mubr.f32.gmra.mrb[0].mxu0 %v121
    %v211 = vpop.f32.mrb[0].mxu0
    %v212 = vadd.f32 0.0, %v211
    %v213 = vpop.f32.mrb[0].mxu0
    %214 = vmatprep.mubr.f32.mxu0 0.0
    %215 = vmatmul.mubr.f32.gmra.mrb[0].mxu0 %v124
    %v216 = vpop.f32.mrb[0].mxu0
    %v217 = vadd.f32 0.0, %v216
    %v218 = vpop.f32.mrb[0].mxu0
    %219 = vmatprep.mubr.f32.mxu0 0.0
    %220 = vmatmul.mubr.f32.gmra.mrb[0].mxu0 %v127
    %v221 = vpop.f32.mrb[0].mxu0
    %v222 = vadd.f32 0.0, %v221
    %v223 = vpop.f32.mrb[0].mxu0
    %224 = vmatprep.mubr.f32.mxu0 0.0
    %225 = vmatmul.mubr.f32.gmra.mrb[0].mxu0 %v130
    %v226 = vpop.f32.mrb[0].mxu0
    %v227 = vadd.f32 0.0, %v226
    %v228 = vpop.f32.mrb[0].mxu0
    %229 = vmatprep.mubr.f32.mxu0 0.0
    %230 = vmatmul.mubr.f32.gmra.mrb[0].mxu0 %v133
    %v231 = vpop.f32.mrb[0].mxu0
    %v232 = vadd.f32 0.0, %v231
    %v233 = vpop.f32.mrb[0].mxu0
    %234 = vdwg.mxu0
    %v235 = vld [vmem:[%s4] sm:$0x1]
    %v237 = vlaneseq
    %v238 = vshrl.u32 %v237, 7
    %v239 = vsub.s32 0, %v238
    %v240 = vrot.slane %v235, %v239
    %vm242 = vcmask 408576
    %v244 = vsel %vm242, %v94, 0
    %v247 = vsel %vm242, %v95, 0
    %v250 = vsel %vm242, %v96, 0
    %v253 = vsel %vm242, %v97, 0
    %v256 = vsel %vm242, %v98, 0
    %v259 = vsel %vm242, %v99, 0
    %v262 = vsel %vm242, %v100, 0
    %v265 = vsel %vm242, %v101, 0
    %vm267 = vcmask 1041408
    %v269 = vsel %vm267, %v232, 0
    %271 = vmatprep.subr.mxu0 0.0
    %272 = vmatpush1.msra.mxu0 %v202
    %273 = vmatprep.subr.mxu0 0.0
    %274 = vmatpush1.msra.mxu0 %v207
    %275 = vmatprep.subr.mxu0 0.0
    %276 = vmatpush1.msra.mxu0 %v212
    %277 = vmatprep.subr.mxu0 0.0
    %278 = vmatpush1.msra.mxu0 %v217
    %279 = vmatprep.subr.mxu0 0.0
    %280 = vmatpush1.msra.mxu0 %v222
    %281 = vmatprep.subr.mxu0 0.0
    %282 = vmatpush1.msra.mxu0 %v227
    %283 = vmatprep.subr.mxu0 0.0
    %284 = vmatpush1.msra.mxu0 %v269
    %285 = vmatprep.subr.mxu0 0.0
    %286 = vmatpush1.msra.mxu0 0.0
    %287 = vmatprep.subr.mxu0 0.0
    %288 = vmatpush1.msra.mxu0 0.0
    %289 = vmatprep.subr.mxu0 0.0
    %290 = vmatpush1.msra.mxu0 0.0
    %291 = vmatprep.subr.mxu0 0.0
    %292 = vmatpush1.msra.mxu0 0.0
    %293 = vmatprep.subr.mxu0 0.0
    %294 = vmatpush1.msra.mxu0 0.0
    %295 = vmatprep.subr.mxu0 0.0
    %296 = vmatpush1.msra.mxu0 0.0
    %297 = vmatprep.subr.mxu0 0.0
    %298 = vmatpush1.msra.mxu0 0.0
    %299 = vmatprep.subr.mxu0 0.0
    %300 = vmatpush1.msra.mxu0 0.0
    %301 = vmatprep.subr.mxu0 0.0
    %302 = vmatpush1.msra.mxu0 0.0
    %303 = vmatprep.subr.mxu0 0.0
    %304 = vmatpush1.msra.mxu0 0.0
    %305 = vmatprep.subr.mxu0 0.0
    %306 = vmatpush1.msra.mxu0 0.0
    %307 = vmatprep.subr.mxu0 0.0
    %308 = vmatpush1.msra.mxu0 0.0
    %309 = vmatprep.subr.mxu0 0.0
    %310 = vmatpush1.msra.mxu0 0.0
    %311 = vmatprep.subr.mxu0 0.0
    %312 = vmatpush1.msra.mxu0 0.0
    %313 = vmatprep.subr.mxu0 0.0
    %314 = vmatpush1.msra.mxu0 0.0
    %315 = vmatprep.subr.mxu0 0.0
    %316 = vmatpush1.msra.mxu0 0.0
    %317 = vmatprep.subr.mxu0 0.0
    %318 = vmatpush1.msra.mxu0 0.0
    %319 = vmatprep.subr.mxu0 0.0
    %320 = vmatpush1.msra.mxu0 0.0
    %321 = vmatprep.subr.mxu0 0.0
    %322 = vmatpush1.msra.mxu0 0.0
    %323 = vmatprep.subr.mxu0 0.0
    %324 = vmatpush1.msra.mxu0 0.0
    %325 = vmatprep.subr.mxu0 0.0
    %326 = vmatpush1.msra.mxu0 0.0
    %327 = vmatprep.subr.mxu0 0.0
    %328 = vmatpush1.msra.mxu0 0.0
    %329 = vmatprep.subr.mxu0 0.0
    %330 = vmatpush1.msra.mxu0 0.0
    %331 = vmatprep.subr.mxu0 0.0
    %332 = vmatpush1.msra.mxu0 0.0
    %333 = vmatprep.subr.mxu0 0.0
    %334 = vmatpush1.msra.mxu0 0.0
    %335 = vmatprep.mubr.f32.mxu0 0.0
    %336 = vmatmul.mubr.f32.gmra.mrb[0].mxu0 %v244
    %v337 = vpop.f32.mrb[0].mxu0
    %v338 = vadd.f32 %v240, %v337
    %v339 = vpop.f32.mrb[0].mxu0
    %340 = vmatprep.mubr.f32.mxu0 0.0
    %341 = vmatmul.mubr.f32.gmra.mrb[0].mxu0 %v247
    %v342 = vpop.f32.mrb[0].mxu0
    %v343 = vadd.f32 %v240, %v342
    %v344 = vpop.f32.mrb[0].mxu0
    %345 = vmatprep.mubr.f32.mxu0 0.0
    %346 = vmatmul.mubr.f32.gmra.mrb[0].mxu0 %v250
    %v347 = vpop.f32.mrb[0].mxu0
    %v348 = vadd.f32 %v240, %v347
    %v349 = vpop.f32.mrb[0].mxu0
    %350 = vmatprep.mubr.f32.mxu0 0.0
    %351 = vmatmul.mubr.f32.gmra.mrb[0].mxu0 %v253
    %v352 = vpop.f32.mrb[0].mxu0
    %v353 = vadd.f32 %v240, %v352
    %v354 = vpop.f32.mrb[0].mxu0
    %355 = vmatprep.mubr.f32.mxu0 0.0
    %356 = vmatmul.mubr.f32.gmra.mrb[0].mxu0 %v256
    %v357 = vpop.f32.mrb[0].mxu0
    %v358 = vadd.f32 %v240, %v357
    %v359 = vpop.f32.mrb[0].mxu0
    %360 = vmatprep.mubr.f32.mxu0 0.0
    %361 = vmatmul.mubr.f32.gmra.mrb[0].mxu0 %v259
    %v362 = vpop.f32.mrb[0].mxu0
    %v363 = vadd.f32 %v240, %v362
    %v364 = vpop.f32.mrb[0].mxu0
    %365 = vmatprep.mubr.f32.mxu0 0.0
    %366 = vmatmul.mubr.f32.gmra.mrb[0].mxu0 %v262
    %v367 = vpop.f32.mrb[0].mxu0
    %v368 = vadd.f32 %v240, %v367
    %v369 = vpop.f32.mrb[0].mxu0
    %370 = vmatprep.mubr.f32.mxu0 0.0
    %371 = vmatmul.mubr.f32.gmra.mrb[0].mxu0 %v265
    %v372 = vpop.f32.mrb[0].mxu0
    %v373 = vadd.f32 %v240, %v372
    %v374 = vpop.f32.mrb[0].mxu0
    %375 = vdwg.mxu0
    %v376 = vld [vmem:[%s3] sm:$0xff]
    %v377 = vld [vmem:[%s3 + $0x8] sm:$0xff]
    %v378 = vld [vmem:[%s3 + $0x10] sm:$0xff]
    %v379 = vld [vmem:[%s3 + $0x18] sm:$0xff]
    %v381 = vsel %vm113, 0.0, 0
    %383 = vmatprep.subr.mxu0 0.0
    %384 = vmatpush1.msra.mxu0 %v376
    %385 = vmatprep.subr.mxu0 0.0
    %386 = vmatpush1.msra.mxu0 %v377
    %387 = vmatprep.subr.mxu0 0.0
    %388 = vmatpush1.msra.mxu0 %v378
    %389 = vmatprep.subr.mxu0 0.0
    %390 = vmatpush1.msra.mxu0 %v379
    %391 = vmatprep.subr.mxu0 0.0
    %392 = vmatpush1.msra.mxu0 0.0
    %393 = vmatprep.subr.mxu0 0.0
    %394 = vmatpush1.msra.mxu0 0.0
    %395 = vmatprep.subr.mxu0 0.0
    %396 = vmatpush1.msra.mxu0 0.0
    %397 = vmatprep.subr.mxu0 0.0
    %398 = vmatpush1.msra.mxu0 0.0
    %399 = vmatprep.subr.mxu0 0.0
    %400 = vmatpush1.msra.mxu0 0.0
    %401 = vmatprep.subr.mxu0 0.0
    %402 = vmatpush1.msra.mxu0 0.0
    %403 = vmatprep.subr.mxu0 0.0
    %404 = vmatpush1.msra.mxu0 0.0
    %405 = vmatprep.subr.mxu0 0.0
    %406 = vmatpush1.msra.mxu0 0.0
    %407 = vmatprep.subr.mxu0 0.0
    %408 = vmatpush1.msra.mxu0 0.0
    %409 = vmatprep.subr.mxu0 0.0
    %410 = vmatpush1.msra.mxu0 0.0
    %411 = vmatprep.subr.mxu0 0.0
    %412 = vmatpush1.msra.mxu0 0.0
    %413 = vmatprep.subr.mxu0 0.0
    %414 = vmatpush1.msra.mxu0 0.0
    %415 = vmatprep.subr.mxu0 0.0
    %416 = vmatpush1.msra.mxu0 0.0
    %417 = vmatprep.subr.mxu0 0.0
    %418 = vmatpush1.msra.mxu0 0.0
    %419 = vmatprep.subr.mxu0 0.0
    %420 = vmatpush1.msra.mxu0 0.0
    %421 = vmatprep.subr.mxu0 0.0
    %422 = vmatpush1.msra.mxu0 0.0
    %423 = vmatprep.subr.mxu0 0.0
    %424 = vmatpush1.msra.mxu0 0.0
    %425 = vmatprep.subr.mxu0 0.0
    %426 = vmatpush1.msra.mxu0 0.0
    %427 = vmatprep.subr.mxu0 0.0
    %428 = vmatpush1.msra.mxu0 0.0
    %429 = vmatprep.subr.mxu0 0.0
    %430 = vmatpush1.msra.mxu0 0.0
    %431 = vmatprep.subr.mxu0 0.0
    %432 = vmatpush1.msra.mxu0 0.0
    %433 = vmatprep.subr.mxu0 0.0
    %434 = vmatpush1.msra.mxu0 0.0
    %435 = vmatprep.subr.mxu0 0.0
    %436 = vmatpush1.msra.mxu0 0.0
    %437 = vmatprep.subr.mxu0 0.0
    %438 = vmatpush1.msra.mxu0 0.0
    %439 = vmatprep.subr.mxu0 0.0
    %440 = vmatpush1.msra.mxu0 0.0
    %441 = vmatprep.subr.mxu0 0.0
    %442 = vmatpush1.msra.mxu0 0.0
    %443 = vmatprep.subr.mxu0 0.0
    %444 = vmatpush1.msra.mxu0 0.0
    %445 = vmatprep.subr.mxu0 0.0
    %446 = vmatpush1.msra.mxu0 0.0
    %447 = vmatprep.mubr.f32.mxu0 0.0
    %448 = vmatmul.mubr.f32.gmra.mrb[0].mxu0 %v381
    %v449 = vpop.f32.mrb[0].mxu0
    %v450 = vadd.f32 0.0, %v449
    %v451 = vpop.f32.mrb[0].mxu0
    %452 = vdwg.mxu0
    %v453 = vadd.f32 %v338, %v450
    %v454 = vxor.u32 %v453, 2147483648
    %v455 = vmul.f32 %v454, 1.442695
    %v456 = vpow.pop %v455
    %v457 = vadd.f32 %v456, 1.0
    %v458 = vrcp.pop %v457
    %v459 = vmul.f32 1.0, %v458
    %v460 = vtanh.pop %v453
    %v461 = vmul.f32 %v459, 0.0
    %463 = vrot.lane.b32.xlu0 %v460, 64
    %v464 = vpop.permute.xlu0 %463
    %v466 = vmul.f32 %v459, %v464
    %468 = vrot.lane.b32.xlu0 %v466, 32
    %v469 = vpop.permute.xlu0 %468
    %v471 = vadd.f32 %v461, %v469
    %v472 = vtanh.pop %v471
    %474 = vrot.lane.b32.xlu0 %v472, 64
    %v475 = vpop.permute.xlu0 %474
    %v477 = vmul.f32 %v459, %v475
    %479 = vrot.lane.b32.xlu0 %v477, 32
    %v480 = vpop.permute.xlu0 %479
    %v481 = vsel %vm113, %v480, 0
    %483 = vmatprep.subr.mxu0 0.0
    %484 = vmatpush1.msra.mxu0 %v376
    %485 = vmatprep.subr.mxu0 0.0
    %486 = vmatpush1.msra.mxu0 %v377
    %487 = vmatprep.subr.mxu0 0.0
    %488 = vmatpush1.msra.mxu0 %v378
    %489 = vmatprep.subr.mxu0 0.0
    %490 = vmatpush1.msra.mxu0 %v379
    %491 = vmatprep.subr.mxu0 0.0
    %492 = vmatpush1.msra.mxu0 0.0
    %493 = vmatprep.subr.mxu0 0.0
    %494 = vmatpush1.msra.mxu0 0.0
    %495 = vmatprep.subr.mxu0 0.0
    %496 = vmatpush1.msra.mxu0 0.0
    %497 = vmatprep.subr.mxu0 0.0
    %498 = vmatpush1.msra.mxu0 0.0
    %499 = vmatprep.subr.mxu0 0.0
    %500 = vmatpush1.msra.mxu0 0.0
    %501 = vmatprep.subr.mxu0 0.0
    %502 = vmatpush1.msra.mxu0 0.0
    %503 = vmatprep.subr.mxu0 0.0
    %504 = vmatpush1.msra.mxu0 0.0
    %505 = vmatprep.subr.mxu0 0.0
    %506 = vmatpush1.msra.mxu0 0.0
    %507 = vmatprep.subr.mxu0 0.0
    %508 = vmatpush1.msra.mxu0 0.0
    %509 = vmatprep.subr.mxu0 0.0
    %510 = vmatpush1.msra.mxu0 0.0
    %511 = vmatprep.subr.mxu0 0.0
    %512 = vmatpush1.msra.mxu0 0.0
    %513 = vmatprep.subr.mxu0 0.0
    %514 = vmatpush1.msra.mxu0 0.0
    %515 = vmatprep.subr.mxu0 0.0
    %516 = vmatpush1.msra.mxu0 0.0
    %517 = vmatprep.subr.mxu0 0.0
    %518 = vmatpush1.msra.mxu0 0.0
    %519 = vmatprep.subr.mxu0 0.0
    %520 = vmatpush1.msra.mxu0 0.0
    %521 = vmatprep.subr.mxu0 0.0
    %522 = vmatpush1.msra.mxu0 0.0
    %523 = vmatprep.subr.mxu0 0.0
    %524 = vmatpush1.msra.mxu0 0.0
    %525 = vmatprep.subr.mxu0 0.0
    %526 = vmatpush1.msra.mxu0 0.0
    %527 = vmatprep.subr.mxu0 0.0
    %528 = vmatpush1.msra.mxu0 0.0
    %529 = vmatprep.subr.mxu0 0.0
    %530 = vmatpush1.msra.mxu0 0.0
    %531 = vmatprep.subr.mxu0 0.0
    %532 = vmatpush1.msra.mxu0 0.0
    %533 = vmatprep.subr.mxu0 0.0
    %534 = vmatpush1.msra.mxu0 0.0
    %535 = vmatprep.subr.mxu0 0.0
    %536 = vmatpush1.msra.mxu0 0.0
    %537 = vmatprep.subr.mxu0 0.0
    %538 = vmatpush1.msra.mxu0 0.0
    %539 = vmatprep.subr.mxu0 0.0
    %540 = vmatpush1.msra.mxu0 0.0
    %541 = vmatprep.subr.mxu0 0.0
    %542 = vmatpush1.msra.mxu0 0.0
    %543 = vmatprep.subr.mxu0 0.0
    %544 = vmatpush1.msra.mxu0 0.0
    %545 = vmatprep.subr.mxu0 0.0
    %546 = vmatpush1.msra.mxu0 0.0
    %547 = vmatprep.mubr.f32.mxu0 0.0
    %548 = vmatmul.mubr.f32.gmra.mrb[0].mxu0 %v481
    %v549 = vpop.f32.mrb[0].mxu0
    %v550 = vadd.f32 0.0, %v549
    %v551 = vpop.f32.mrb[0].mxu0
    %552 = vdwg.mxu0
    %v553 = vadd.f32 %v343, %v550
    %v554 = vxor.u32 %v553, 2147483648
    %v555 = vmul.f32 %v554, 1.442695
    %v556 = vpow.pop %v555
    %v557 = vadd.f32 %v556, 1.0
    %v558 = vrcp.pop %v557
    %v559 = vmul.f32 1.0, %v558
    %v560 = vtanh.pop %v553
    %v561 = vmul.f32 %v559, %v471
    %563 = vrot.lane.b32.xlu0 %v560, 64
    %v564 = vpop.permute.xlu0 %563
    %v566 = vmul.f32 %v559, %v564
    %568 = vrot.lane.b32.xlu0 %v566, 32
    %v569 = vpop.permute.xlu0 %568
    %v571 = vadd.f32 %v561, %v569
    %v572 = vtanh.pop %v571
    %574 = vrot.lane.b32.xlu0 %v572, 64
    %v575 = vpop.permute.xlu0 %574
    %v577 = vmul.f32 %v559, %v575
    %579 = vrot.lane.b32.xlu0 %v577, 32
    %v580 = vpop.permute.xlu0 %579
    %v581 = vsel %vm113, %v580, 0
    %583 = vmatprep.subr.mxu0 0.0
    %584 = vmatpush1.msra.mxu0 %v376
    %585 = vmatprep.subr.mxu0 0.0
    %586 = vmatpush1.msra.mxu0 %v377
    %587 = vmatprep.subr.mxu0 0.0
    %588 = vmatpush1.msra.mxu0 %v378
    %589 = vmatprep.subr.mxu0 0.0
    %590 = vmatpush1.msra.mxu0 %v379
    %591 = vmatprep.subr.mxu0 0.0
    %592 = vmatpush1.msra.mxu0 0.0
    %593 = vmatprep.subr.mxu0 0.0
    %594 = vmatpush1.msra.mxu0 0.0
    %595 = vmatprep.subr.mxu0 0.0
    %596 = vmatpush1.msra.mxu0 0.0
    %597 = vmatprep.subr.mxu0 0.0
    %598 = vmatpush1.msra.mxu0 0.0
    %599 = vmatprep.subr.mxu0 0.0
    %600 = vmatpush1.msra.mxu0 0.0
    %601 = vmatprep.subr.mxu0 0.0
    %602 = vmatpush1.msra.mxu0 0.0
    %603 = vmatprep.subr.mxu0 0.0
    %604 = vmatpush1.msra.mxu0 0.0
    %605 = vmatprep.subr.mxu0 0.0
    %606 = vmatpush1.msra.mxu0 0.0
    %607 = vmatprep.subr.mxu0 0.0
    %608 = vmatpush1.msra.mxu0 0.0
    %609 = vmatprep.subr.mxu0 0.0
    %610 = vmatpush1.msra.mxu0 0.0
    %611 = vmatprep.subr.mxu0 0.0
    %612 = vmatpush1.msra.mxu0 0.0
    %613 = vmatprep.subr.mxu0 0.0
    %614 = vmatpush1.msra.mxu0 0.0
    %615 = vmatprep.subr.mxu0 0.0
    %616 = vmatpush1.msra.mxu0 0.0
    %617 = vmatprep.subr.mxu0 0.0
    %618 = vmatpush1.msra.mxu0 0.0
    %619 = vmatprep.subr.mxu0 0.0
    %620 = vmatpush1.msra.mxu0 0.0
    %621 = vmatprep.subr.mxu0 0.0
    %622 = vmatpush1.msra.mxu0 0.0
    %623 = vmatprep.subr.mxu0 0.0
    %624 = vmatpush1.msra.mxu0 0.0
    %625 = vmatprep.subr.mxu0 0.0
    %626 = vmatpush1.msra.mxu0 0.0
    %627 = vmatprep.subr.mxu0 0.0
    %628 = vmatpush1.msra.mxu0 0.0
    %629 = vmatprep.subr.mxu0 0.0
    %630 = vmatpush1.msra.mxu0 0.0
    %631 = vmatprep.subr.mxu0 0.0
    %632 = vmatpush1.msra.mxu0 0.0
    %633 = vmatprep.subr.mxu0 0.0
    %634 = vmatpush1.msra.mxu0 0.0
    %635 = vmatprep.subr.mxu0 0.0
    %636 = vmatpush1.msra.mxu0 0.0
    %637 = vmatprep.subr.mxu0 0.0
    %638 = vmatpush1.msra.mxu0 0.0
    %639 = vmatprep.subr.mxu0 0.0
    %640 = vmatpush1.msra.mxu0 0.0
    %641 = vmatprep.subr.mxu0 0.0
    %642 = vmatpush1.msra.mxu0 0.0
    %643 = vmatprep.subr.mxu0 0.0
    %644 = vmatpush1.msra.mxu0 0.0
    %645 = vmatprep.subr.mxu0 0.0
    %646 = vmatpush1.msra.mxu0 0.0
    %647 = vmatprep.mubr.f32.mxu0 0.0
    %648 = vmatmul.mubr.f32.gmra.mrb[0].mxu0 %v581
    %v649 = vpop.f32.mrb[0].mxu0
    %v650 = vadd.f32 0.0, %v649
    %v651 = vpop.f32.mrb[0].mxu0
    %652 = vdwg.mxu0
    %v653 = vadd.f32 %v348, %v650
    %v654 = vxor.u32 %v653, 2147483648
    %v655 = vmul.f32 %v654, 1.442695
    %v656 = vpow.pop %v655
    %v657 = vadd.f32 %v656, 1.0
    %v658 = vrcp.pop %v657
    %v659 = vmul.f32 1.0, %v658
    %v660 = vtanh.pop %v653
    %v661 = vmul.f32 %v659, %v571
    %663 = vrot.lane.b32.xlu0 %v660, 64
    %v664 = vpop.permute.xlu0 %663
    %v666 = vmul.f32 %v659, %v664
    %668 = vrot.lane.b32.xlu0 %v666, 32
    %v669 = vpop.permute.xlu0 %668
    %v671 = vadd.f32 %v661, %v669
    %v672 = vtanh.pop %v671
    %674 = vrot.lane.b32.xlu0 %v672, 64
    %v675 = vpop.permute.xlu0 %674
    %v677 = vmul.f32 %v659, %v675
    %679 = vrot.lane.b32.xlu0 %v677, 32
    %v680 = vpop.permute.xlu0 %679
    %v681 = vsel %vm113, %v680, 0
    %683 = vmatprep.subr.mxu0 0.0
    %684 = vmatpush1.msra.mxu0 %v376
    %685 = vmatprep.subr.mxu0 0.0
    %686 = vmatpush1.msra.mxu0 %v377
    %687 = vmatprep.subr.mxu0 0.0
    %688 = vmatpush1.msra.mxu0 %v378
    %689 = vmatprep.subr.mxu0 0.0
    %690 = vmatpush1.msra.mxu0 %v379
    %691 = vmatprep.subr.mxu0 0.0
    %692 = vmatpush1.msra.mxu0 0.0
    %693 = vmatprep.subr.mxu0 0.0
    %694 = vmatpush1.msra.mxu0 0.0
    %695 = vmatprep.subr.mxu0 0.0
    %696 = vmatpush1.msra.mxu0 0.0
    %697 = vmatprep.subr.mxu0 0.0
    %698 = vmatpush1.msra.mxu0 0.0
    %699 = vmatprep.subr.mxu0 0.0
    %700 = vmatpush1.msra.mxu0 0.0
    %701 = vmatprep.subr.mxu0 0.0
    %702 = vmatpush1.msra.mxu0 0.0
    %703 = vmatprep.subr.mxu0 0.0
    %704 = vmatpush1.msra.mxu0 0.0
    %705 = vmatprep.subr.mxu0 0.0
    %706 = vmatpush1.msra.mxu0 0.0
    %707 = vmatprep.subr.mxu0 0.0
    %708 = vmatpush1.msra.mxu0 0.0
    %709 = vmatprep.subr.mxu0 0.0
    %710 = vmatpush1.msra.mxu0 0.0
    %711 = vmatprep.subr.mxu0 0.0
    %712 = vmatpush1.msra.mxu0 0.0
    %713 = vmatprep.subr.mxu0 0.0
    %714 = vmatpush1.msra.mxu0 0.0
    %715 = vmatprep.subr.mxu0 0.0
    %716 = vmatpush1.msra.mxu0 0.0
    %717 = vmatprep.subr.mxu0 0.0
    %718 = vmatpush1.msra.mxu0 0.0
    %719 = vmatprep.subr.mxu0 0.0
    %720 = vmatpush1.msra.mxu0 0.0
    %721 = vmatprep.subr.mxu0 0.0
    %722 = vmatpush1.msra.mxu0 0.0
    %723 = vmatprep.subr.mxu0 0.0
    %724 = vmatpush1.msra.mxu0 0.0
    %725 = vmatprep.subr.mxu0 0.0
    %726 = vmatpush1.msra.mxu0 0.0
    %727 = vmatprep.subr.mxu0 0.0
    %728 = vmatpush1.msra.mxu0 0.0
    %729 = vmatprep.subr.mxu0 0.0
    %730 = vmatpush1.msra.mxu0 0.0
    %731 = vmatprep.subr.mxu0 0.0
    %732 = vmatpush1.msra.mxu0 0.0
    %733 = vmatprep.subr.mxu0 0.0
    %734 = vmatpush1.msra.mxu0 0.0
    %735 = vmatprep.subr.mxu0 0.0
    %736 = vmatpush1.msra.mxu0 0.0
    %737 = vmatprep.subr.mxu0 0.0
    %738 = vmatpush1.msra.mxu0 0.0
    %739 = vmatprep.subr.mxu0 0.0
    %740 = vmatpush1.msra.mxu0 0.0
    %741 = vmatprep.subr.mxu0 0.0
    %742 = vmatpush1.msra.mxu0 0.0
    %743 = vmatprep.subr.mxu0 0.0
    %744 = vmatpush1.msra.mxu0 0.0
    %745 = vmatprep.subr.mxu0 0.0
    %746 = vmatpush1.msra.mxu0 0.0
    %747 = vmatprep.mubr.f32.mxu0 0.0
    %748 = vmatmul.mubr.f32.gmra.mrb[0].mxu0 %v681
    %v749 = vpop.f32.mrb[0].mxu0
    %v750 = vadd.f32 0.0, %v749
    %v751 = vpop.f32.mrb[0].mxu0
    %752 = vdwg.mxu0
    %v753 = vadd.f32 %v353, %v750
    %v754 = vxor.u32 %v753, 2147483648
    %v755 = vmul.f32 %v754, 1.442695
    %v756 = vpow.pop %v755
    %v757 = vadd.f32 %v756, 1.0
    %v758 = vrcp.pop %v757
    %v759 = vmul.f32 1.0, %v758
    %v760 = vtanh.pop %v753
    %v761 = vmul.f32 %v759, %v671
    %763 = vrot.lane.b32.xlu0 %v760, 64
    %v764 = vpop.permute.xlu0 %763
    %v766 = vmul.f32 %v759, %v764
    %768 = vrot.lane.b32.xlu0 %v766, 32
    %v769 = vpop.permute.xlu0 %768
    %v771 = vadd.f32 %v761, %v769
    %v772 = vtanh.pop %v771
    %774 = vrot.lane.b32.xlu0 %v772, 64
    %v775 = vpop.permute.xlu0 %774
    %v777 = vmul.f32 %v759, %v775
    %779 = vrot.lane.b32.xlu0 %v777, 32
    %v780 = vpop.permute.xlu0 %779
    %v781 = vsel %vm113, %v780, 0
    %783 = vmatprep.subr.mxu0 0.0
    %784 = vmatpush1.msra.mxu0 %v376
    %785 = vmatprep.subr.mxu0 0.0
    %786 = vmatpush1.msra.mxu0 %v377
    %787 = vmatprep.subr.mxu0 0.0
    %788 = vmatpush1.msra.mxu0 %v378
    %789 = vmatprep.subr.mxu0 0.0
    %790 = vmatpush1.msra.mxu0 %v379
    %791 = vmatprep.subr.mxu0 0.0
    %792 = vmatpush1.msra.mxu0 0.0
    %793 = vmatprep.subr.mxu0 0.0
    %794 = vmatpush1.msra.mxu0 0.0
    %795 = vmatprep.subr.mxu0 0.0
    %796 = vmatpush1.msra.mxu0 0.0
    %797 = vmatprep.subr.mxu0 0.0
    %798 = vmatpush1.msra.mxu0 0.0
    %799 = vmatprep.subr.mxu0 0.0
    %800 = vmatpush1.msra.mxu0 0.0
    %801 = vmatprep.subr.mxu0 0.0
    %802 = vmatpush1.msra.mxu0 0.0
    %803 = vmatprep.subr.mxu0 0.0
    %804 = vmatpush1.msra.mxu0 0.0
    %805 = vmatprep.subr.mxu0 0.0
    %806 = vmatpush1.msra.mxu0 0.0
    %807 = vmatprep.subr.mxu0 0.0
    %808 = vmatpush1.msra.mxu0 0.0
    %809 = vmatprep.subr.mxu0 0.0
    %810 = vmatpush1.msra.mxu0 0.0
    %811 = vmatprep.subr.mxu0 0.0
    %812 = vmatpush1.msra.mxu0 0.0
    %813 = vmatprep.subr.mxu0 0.0
    %814 = vmatpush1.msra.mxu0 0.0
    %815 = vmatprep.subr.mxu0 0.0
    %816 = vmatpush1.msra.mxu0 0.0
    %817 = vmatprep.subr.mxu0 0.0
    %818 = vmatpush1.msra.mxu0 0.0
    %819 = vmatprep.subr.mxu0 0.0
    %820 = vmatpush1.msra.mxu0 0.0
    %821 = vmatprep.subr.mxu0 0.0
    %822 = vmatpush1.msra.mxu0 0.0
    %823 = vmatprep.subr.mxu0 0.0
    %824 = vmatpush1.msra.mxu0 0.0
    %825 = vmatprep.subr.mxu0 0.0
    %826 = vmatpush1.msra.mxu0 0.0
    %827 = vmatprep.subr.mxu0 0.0
    %828 = vmatpush1.msra.mxu0 0.0
    %829 = vmatprep.subr.mxu0 0.0
    %830 = vmatpush1.msra.mxu0 0.0
    %831 = vmatprep.subr.mxu0 0.0
    %832 = vmatpush1.msra.mxu0 0.0
    %833 = vmatprep.subr.mxu0 0.0
    %834 = vmatpush1.msra.mxu0 0.0
    %835 = vmatprep.subr.mxu0 0.0
    %836 = vmatpush1.msra.mxu0 0.0
    %837 = vmatprep.subr.mxu0 0.0
    %838 = vmatpush1.msra.mxu0 0.0
    %839 = vmatprep.subr.mxu0 0.0
    %840 = vmatpush1.msra.mxu0 0.0
    %841 = vmatprep.subr.mxu0 0.0
    %842 = vmatpush1.msra.mxu0 0.0
    %843 = vmatprep.subr.mxu0 0.0
    %844 = vmatpush1.msra.mxu0 0.0
    %845 = vmatprep.subr.mxu0 0.0
    %846 = vmatpush1.msra.mxu0 0.0
    %847 = vmatprep.mubr.f32.mxu0 0.0
    %848 = vmatmul.mubr.f32.gmra.mrb[0].mxu0 %v781
    %v849 = vpop.f32.mrb[0].mxu0
    %v850 = vadd.f32 0.0, %v849
    %v851 = vpop.f32.mrb[0].mxu0
    %852 = vdwg.mxu0
    %v853 = vadd.f32 %v358, %v850
    %v854 = vxor.u32 %v853, 2147483648
    %v855 = vmul.f32 %v854, 1.442695
    %v856 = vpow.pop %v855
    %v857 = vadd.f32 %v856, 1.0
    %v858 = vrcp.pop %v857
    %v859 = vmul.f32 1.0, %v858
    %v860 = vtanh.pop %v853
    %v861 = vmul.f32 %v859, %v771
    %863 = vrot.lane.b32.xlu0 %v860, 64
    %v864 = vpop.permute.xlu0 %863
    %v866 = vmul.f32 %v859, %v864
    %868 = vrot.lane.b32.xlu0 %v866, 32
    %v869 = vpop.permute.xlu0 %868
    %v871 = vadd.f32 %v861, %v869
    %v872 = vtanh.pop %v871
    %874 = vrot.lane.b32.xlu0 %v872, 64
    %v875 = vpop.permute.xlu0 %874
    %v877 = vmul.f32 %v859, %v875
    %879 = vrot.lane.b32.xlu0 %v877, 32
    %v880 = vpop.permute.xlu0 %879
    %v881 = vsel %vm113, %v880, 0
    %883 = vmatprep.subr.mxu0 0.0
    %884 = vmatpush1.msra.mxu0 %v376
    %885 = vmatprep.subr.mxu0 0.0
    %886 = vmatpush1.msra.mxu0 %v377
    %887 = vmatprep.subr.mxu0 0.0
    %888 = vmatpush1.msra.mxu0 %v378
    %889 = vmatprep.subr.mxu0 0.0
    %890 = vmatpush1.msra.mxu0 %v379
    %891 = vmatprep.subr.mxu0 0.0
    %892 = vmatpush1.msra.mxu0 0.0
    %893 = vmatprep.subr.mxu0 0.0
    %894 = vmatpush1.msra.mxu0 0.0
    %895 = vmatprep.subr.mxu0 0.0
    %896 = vmatpush1.msra.mxu0 0.0
    %897 = vmatprep.subr.mxu0 0.0
    %898 = vmatpush1.msra.mxu0 0.0
    %899 = vmatprep.subr.mxu0 0.0
    %900 = vmatpush1.msra.mxu0 0.0
    %901 = vmatprep.subr.mxu0 0.0
    %902 = vmatpush1.msra.mxu0 0.0
    %903 = vmatprep.subr.mxu0 0.0
    %904 = vmatpush1.msra.mxu0 0.0
    %905 = vmatprep.subr.mxu0 0.0
    %906 = vmatpush1.msra.mxu0 0.0
    %907 = vmatprep.subr.mxu0 0.0
    %908 = vmatpush1.msra.mxu0 0.0
    %909 = vmatprep.subr.mxu0 0.0
    %910 = vmatpush1.msra.mxu0 0.0
    %911 = vmatprep.subr.mxu0 0.0
    %912 = vmatpush1.msra.mxu0 0.0
    %913 = vmatprep.subr.mxu0 0.0
    %914 = vmatpush1.msra.mxu0 0.0
    %915 = vmatprep.subr.mxu0 0.0
    %916 = vmatpush1.msra.mxu0 0.0
    %917 = vmatprep.subr.mxu0 0.0
    %918 = vmatpush1.msra.mxu0 0.0
    %919 = vmatprep.subr.mxu0 0.0
    %920 = vmatpush1.msra.mxu0 0.0
    %921 = vmatprep.subr.mxu0 0.0
    %922 = vmatpush1.msra.mxu0 0.0
    %923 = vmatprep.subr.mxu0 0.0
    %924 = vmatpush1.msra.mxu0 0.0
    %925 = vmatprep.subr.mxu0 0.0
    %926 = vmatpush1.msra.mxu0 0.0
    %927 = vmatprep.subr.mxu0 0.0
    %928 = vmatpush1.msra.mxu0 0.0
    %929 = vmatprep.subr.mxu0 0.0
    %930 = vmatpush1.msra.mxu0 0.0
    %931 = vmatprep.subr.mxu0 0.0
    %932 = vmatpush1.msra.mxu0 0.0
    %933 = vmatprep.subr.mxu0 0.0
    %934 = vmatpush1.msra.mxu0 0.0
    %935 = vmatprep.subr.mxu0 0.0
    %936 = vmatpush1.msra.mxu0 0.0
    %937 = vmatprep.subr.mxu0 0.0
    %938 = vmatpush1.msra.mxu0 0.0
    %939 = vmatprep.subr.mxu0 0.0
    %940 = vmatpush1.msra.mxu0 0.0
    %941 = vmatprep.subr.mxu0 0.0
    %942 = vmatpush1.msra.mxu0 0.0
    %943 = vmatprep.subr.mxu0 0.0
    %944 = vmatpush1.msra.mxu0 0.0
    %945 = vmatprep.subr.mxu0 0.0
    %946 = vmatpush1.msra.mxu0 0.0
    %947 = vmatprep.mubr.f32.mxu0 0.0
    %948 = vmatmul.mubr.f32.gmra.mrb[0].mxu0 %v881
    %v949 = vpop.f32.mrb[0].mxu0
    %v950 = vadd.f32 0.0, %v949
    %v951 = vpop.f32.mrb[0].mxu0
    %952 = vdwg.mxu0
    %v953 = vadd.f32 %v363, %v950
    %v954 = vxor.u32 %v953, 2147483648
    %v955 = vmul.f32 %v954, 1.442695
    %v956 = vpow.pop %v955
    %v957 = vadd.f32 %v956, 1.0
    %v958 = vrcp.pop %v957
    %v959 = vmul.f32 1.0, %v958
    %v960 = vtanh.pop %v953
    %v961 = vmul.f32 %v959, %v871
    %963 = vrot.lane.b32.xlu0 %v960, 64
    %v964 = vpop.permute.xlu0 %963
    %v966 = vmul.f32 %v959, %v964
    %968 = vrot.lane.b32.xlu0 %v966, 32
    %v969 = vpop.permute.xlu0 %968
    %v971 = vadd.f32 %v961, %v969
    %v972 = vtanh.pop %v971
    %974 = vrot.lane.b32.xlu0 %v972, 64
    %v975 = vpop.permute.xlu0 %974
    %v977 = vmul.f32 %v959, %v975
    %979 = vrot.lane.b32.xlu0 %v977, 32
    %v980 = vpop.permute.xlu0 %979
    %v981 = vsel %vm113, %v980, 0
    %983 = vmatprep.subr.mxu0 0.0
    %984 = vmatpush1.msra.mxu0 %v376
    %985 = vmatprep.subr.mxu0 0.0
    %986 = vmatpush1.msra.mxu0 %v377
    %987 = vmatprep.subr.mxu0 0.0
    %988 = vmatpush1.msra.mxu0 %v378
    %989 = vmatprep.subr.mxu0 0.0
    %990 = vmatpush1.msra.mxu0 %v379
    %991 = vmatprep.subr.mxu0 0.0
    %992 = vmatpush1.msra.mxu0 0.0
    %993 = vmatprep.subr.mxu0 0.0
    %994 = vmatpush1.msra.mxu0 0.0
    %995 = vmatprep.subr.mxu0 0.0
    %996 = vmatpush1.msra.mxu0 0.0
    %997 = vmatprep.subr.mxu0 0.0
    %998 = vmatpush1.msra.mxu0 0.0
    %999 = vmatprep.subr.mxu0 0.0
    %1000 = vmatpush1.msra.mxu0 0.0
    %1001 = vmatprep.subr.mxu0 0.0
    %1002 = vmatpush1.msra.mxu0 0.0
    %1003 = vmatprep.subr.mxu0 0.0
    %1004 = vmatpush1.msra.mxu0 0.0
    %1005 = vmatprep.subr.mxu0 0.0
    %1006 = vmatpush1.msra.mxu0 0.0
    %1007 = vmatprep.subr.mxu0 0.0
    %1008 = vmatpush1.msra.mxu0 0.0
    %1009 = vmatprep.subr.mxu0 0.0
    %1010 = vmatpush1.msra.mxu0 0.0
    %1011 = vmatprep.subr.mxu0 0.0
    %1012 = vmatpush1.msra.mxu0 0.0
    %1013 = vmatprep.subr.mxu0 0.0
    %1014 = vmatpush1.msra.mxu0 0.0
    %1015 = vmatprep.subr.mxu0 0.0
    %1016 = vmatpush1.msra.mxu0 0.0
    %1017 = vmatprep.subr.mxu0 0.0
    %1018 = vmatpush1.msra.mxu0 0.0
    %1019 = vmatprep.subr.mxu0 0.0
    %1020 = vmatpush1.msra.mxu0 0.0
    %1021 = vmatprep.subr.mxu0 0.0
    %1022 = vmatpush1.msra.mxu0 0.0
    %1023 = vmatprep.subr.mxu0 0.0
    %1024 = vmatpush1.msra.mxu0 0.0
    %1025 = vmatprep.subr.mxu0 0.0
    %1026 = vmatpush1.msra.mxu0 0.0
    %1027 = vmatprep.subr.mxu0 0.0
    %1028 = vmatpush1.msra.mxu0 0.0
    %1029 = vmatprep.subr.mxu0 0.0
    %1030 = vmatpush1.msra.mxu0 0.0
    %1031 = vmatprep.subr.mxu0 0.0
    %1032 = vmatpush1.msra.mxu0 0.0
    %1033 = vmatprep.subr.mxu0 0.0
    %1034 = vmatpush1.msra.mxu0 0.0
    %1035 = vmatprep.subr.mxu0 0.0
    %1036 = vmatpush1.msra.mxu0 0.0
    %1037 = vmatprep.subr.mxu0 0.0
    %1038 = vmatpush1.msra.mxu0 0.0
    %1039 = vmatprep.subr.mxu0 0.0
    %1040 = vmatpush1.msra.mxu0 0.0
    %1041 = vmatprep.subr.mxu0 0.0
    %1042 = vmatpush1.msra.mxu0 0.0
    %1043 = vmatprep.subr.mxu0 0.0
    %1044 = vmatpush1.msra.mxu0 0.0
    %1045 = vmatprep.subr.mxu0 0.0
    %1046 = vmatpush1.msra.mxu0 0.0
    %1047 = vmatprep.mubr.f32.mxu0 0.0
    %1048 = vmatmul.mubr.f32.gmra.mrb[0].mxu0 %v981
    %v1049 = vpop.f32.mrb[0].mxu0
    %v1050 = vadd.f32 0.0, %v1049
    %v1051 = vpop.f32.mrb[0].mxu0
    %1052 = vdwg.mxu0
    %v1053 = vadd.f32 %v368, %v1050
    %v1054 = vxor.u32 %v1053, 2147483648
    %v1055 = vmul.f32 %v1054, 1.442695
    %v1056 = vpow.pop %v1055
    %v1057 = vadd.f32 %v1056, 1.0
    %v1058 = vrcp.pop %v1057
    %v1059 = vmul.f32 1.0, %v1058
    %v1060 = vtanh.pop %v1053
    %v1061 = vmul.f32 %v1059, %v971
    %1063 = vrot.lane.b32.xlu0 %v1060, 64
    %v1064 = vpop.permute.xlu0 %1063
    %v1066 = vmul.f32 %v1059, %v1064
    %1068 = vrot.lane.b32.xlu0 %v1066, 32
    %v1069 = vpop.permute.xlu0 %1068
    %v1071 = vadd.f32 %v1061, %v1069
    %v1072 = vtanh.pop %v1071
    %1074 = vrot.lane.b32.xlu0 %v1072, 64
    %v1075 = vpop.permute.xlu0 %1074
    %v1077 = vmul.f32 %v1059, %v1075
    %1079 = vrot.lane.b32.xlu0 %v1077, 32
    %v1080 = vpop.permute.xlu0 %1079
    %v1081 = vsel %vm113, %v1080, 0
    %1083 = vmatprep.subr.mxu0 0.0
    %1084 = vmatpush1.msra.mxu0 %v376
    %1085 = vmatprep.subr.mxu0 0.0
    %1086 = vmatpush1.msra.mxu0 %v377
    %1087 = vmatprep.subr.mxu0 0.0
    %1088 = vmatpush1.msra.mxu0 %v378
    %1089 = vmatprep.subr.mxu0 0.0
    %1090 = vmatpush1.msra.mxu0 %v379
    %1091 = vmatprep.subr.mxu0 0.0
    %1092 = vmatpush1.msra.mxu0 0.0
    %1093 = vmatprep.subr.mxu0 0.0
    %1094 = vmatpush1.msra.mxu0 0.0
    %1095 = vmatprep.subr.mxu0 0.0
    %1096 = vmatpush1.msra.mxu0 0.0
    %1097 = vmatprep.subr.mxu0 0.0
    %1098 = vmatpush1.msra.mxu0 0.0
    %1099 = vmatprep.subr.mxu0 0.0
    %1100 = vmatpush1.msra.mxu0 0.0
    %1101 = vmatprep.subr.mxu0 0.0
    %1102 = vmatpush1.msra.mxu0 0.0
    %1103 = vmatprep.subr.mxu0 0.0
    %1104 = vmatpush1.msra.mxu0 0.0
    %1105 = vmatprep.subr.mxu0 0.0
    %1106 = vmatpush1.msra.mxu0 0.0
    %1107 = vmatprep.subr.mxu0 0.0
    %1108 = vmatpush1.msra.mxu0 0.0
    %1109 = vmatprep.subr.mxu0 0.0
    %1110 = vmatpush1.msra.mxu0 0.0
    %1111 = vmatprep.subr.mxu0 0.0
    %1112 = vmatpush1.msra.mxu0 0.0
    %1113 = vmatprep.subr.mxu0 0.0
    %1114 = vmatpush1.msra.mxu0 0.0
    %1115 = vmatprep.subr.mxu0 0.0
    %1116 = vmatpush1.msra.mxu0 0.0
    %1117 = vmatprep.subr.mxu0 0.0
    %1118 = vmatpush1.msra.mxu0 0.0
    %1119 = vmatprep.subr.mxu0 0.0
    %1120 = vmatpush1.msra.mxu0 0.0
    %1121 = vmatprep.subr.mxu0 0.0
    %1122 = vmatpush1.msra.mxu0 0.0
    %1123 = vmatprep.subr.mxu0 0.0
    %1124 = vmatpush1.msra.mxu0 0.0
    %1125 = vmatprep.subr.mxu0 0.0
    %1126 = vmatpush1.msra.mxu0 0.0
    %1127 = vmatprep.subr.mxu0 0.0
    %1128 = vmatpush1.msra.mxu0 0.0
    %1129 = vmatprep.subr.mxu0 0.0
    %1130 = vmatpush1.msra.mxu0 0.0
    %1131 = vmatprep.subr.mxu0 0.0
    %1132 = vmatpush1.msra.mxu0 0.0
    %1133 = vmatprep.subr.mxu0 0.0
    %1134 = vmatpush1.msra.mxu0 0.0
    %1135 = vmatprep.subr.mxu0 0.0
    %1136 = vmatpush1.msra.mxu0 0.0
    %1137 = vmatprep.subr.mxu0 0.0
    %1138 = vmatpush1.msra.mxu0 0.0
    %1139 = vmatprep.subr.mxu0 0.0
    %1140 = vmatpush1.msra.mxu0 0.0
    %1141 = vmatprep.subr.mxu0 0.0
    %1142 = vmatpush1.msra.mxu0 0.0
    %1143 = vmatprep.subr.mxu0 0.0
    %1144 = vmatpush1.msra.mxu0 0.0
    %1145 = vmatprep.subr.mxu0 0.0
    %1146 = vmatpush1.msra.mxu0 0.0
    %1147 = vmatprep.mubr.f32.mxu0 0.0
    %1148 = vmatmul.mubr.f32.gmra.mrb[0].mxu0 %v1081
    %v1149 = vpop.f32.mrb[0].mxu0
    %v1150 = vadd.f32 0.0, %v1149
    %v1151 = vpop.f32.mrb[0].mxu0
    %1152 = vdwg.mxu0
    %v1153 = vadd.f32 %v373, %v1150
    %v1154 = vxor.u32 %v1153, 2147483648
    %v1155 = vmul.f32 %v1154, 1.442695
    %v1156 = vpow.pop %v1155
    %v1157 = vadd.f32 %v1156, 1.0
    %v1158 = vrcp.pop %v1157
    %v1159 = vmul.f32 1.0, %v1158
    %v1160 = vtanh.pop %v1153
    %v1161 = vmul.f32 %v1159, %v1071
    %1163 = vrot.lane.b32.xlu0 %v1160, 64
    %v1164 = vpop.permute.xlu0 %1163
    %v1166 = vmul.f32 %v1159, %v1164
    %1168 = vrot.lane.b32.xlu0 %v1166, 32
    %v1169 = vpop.permute.xlu0 %1168
    %v1171 = vadd.f32 %v1161, %v1169
    %v1172 = vtanh.pop %v1171
    %1174 = vrot.lane.b32.xlu0 %v1172, 64
    %v1175 = vpop.permute.xlu0 %1174
    %v1177 = vmul.f32 %v1159, %v1175
    %vm1178 = vcmask 1048320
    %v1179 = vsel %vm1178, %v477, 0.0
    %v1180 = vrot.slane %v1179, 4
    %v1181 = vadd.f32 %v1179, %v1180
    %v1182 = vrot.slane %v1181, 2
    %v1183 = vadd.f32 %v1181, %v1182
    %v1184 = vrot.slane %v1183, 1
    %v1185 = vadd.f32 %v1183, %v1184
    %v1186 = vsel %vm1178, %v577, 0.0
    %v1187 = vrot.slane %v1186, 4
    %v1188 = vadd.f32 %v1186, %v1187
    %v1189 = vrot.slane %v1188, 2
    %v1190 = vadd.f32 %v1188, %v1189
    %v1191 = vrot.slane %v1190, 1
    %v1192 = vadd.f32 %v1190, %v1191
    %v1193 = vsel %vm1178, %v677, 0.0
    %v1194 = vrot.slane %v1193, 4
    %v1195 = vadd.f32 %v1193, %v1194
    %v1196 = vrot.slane %v1195, 2
    %v1197 = vadd.f32 %v1195, %v1196
    %v1198 = vrot.slane %v1197, 1
    %v1199 = vadd.f32 %v1197, %v1198
    %v1200 = vsel %vm1178, %v777, 0.0
    %v1201 = vrot.slane %v1200, 4
    %v1202 = vadd.f32 %v1200, %v1201
    %v1203 = vrot.slane %v1202, 2
    %v1204 = vadd.f32 %v1202, %v1203
    %v1205 = vrot.slane %v1204, 1
    %v1206 = vadd.f32 %v1204, %v1205
    %v1207 = vsel %vm1178, %v877, 0.0
    %v1208 = vrot.slane %v1207, 4
    %v1209 = vadd.f32 %v1207, %v1208
    %v1210 = vrot.slane %v1209, 2
    %v1211 = vadd.f32 %v1209, %v1210
    %v1212 = vrot.slane %v1211, 1
    %v1213 = vadd.f32 %v1211, %v1212
    %v1214 = vsel %vm1178, %v977, 0.0
    %v1215 = vrot.slane %v1214, 4
    %v1216 = vadd.f32 %v1214, %v1215
    %v1217 = vrot.slane %v1216, 2
    %v1218 = vadd.f32 %v1216, %v1217
    %v1219 = vrot.slane %v1218, 1
    %v1220 = vadd.f32 %v1218, %v1219
    %v1221 = vsel %vm1178, %v1077, 0.0
    %v1222 = vrot.slane %v1221, 4
    %v1223 = vadd.f32 %v1221, %v1222
    %v1224 = vrot.slane %v1223, 2
    %v1225 = vadd.f32 %v1223, %v1224
    %v1226 = vrot.slane %v1225, 1
    %v1227 = vadd.f32 %v1225, %v1226
    %v1228 = vsel %vm1178, %v1177, 0.0
    %v1229 = vrot.slane %v1228, 4
    %v1230 = vadd.f32 %v1228, %v1229
    %v1231 = vrot.slane %v1230, 2
    %v1232 = vadd.f32 %v1230, %v1231
    %v1233 = vrot.slane %v1232, 1
    %v1234 = vadd.f32 %v1232, %v1233
    %v1235 = vrcp.pop 8.0
    %v1236 = vmul.f32 %v1185, %v1235
    %v1237 = vmul.f32 %v1192, %v1235
    %v1238 = vmul.f32 %v1199, %v1235
    %v1239 = vmul.f32 %v1206, %v1235
    %v1240 = vmul.f32 %v1213, %v1235
    %v1241 = vmul.f32 %v1220, %v1235
    %v1242 = vmul.f32 %v1227, %v1235
    %v1243 = vmul.f32 %v1234, %v1235
    %v1244 = vsub.f32 %v477, %v1236
    %v1245 = vsub.f32 %v577, %v1237
    %v1246 = vsub.f32 %v677, %v1238
    %v1247 = vsub.f32 %v777, %v1239
    %v1248 = vsub.f32 %v877, %v1240
    %v1249 = vsub.f32 %v977, %v1241
    %v1250 = vsub.f32 %v1077, %v1242
    %v1251 = vsub.f32 %v1177, %v1243
    %v1252 = vmul.f32 %v1244, %v1244
    %v1253 = vmul.f32 %v1245, %v1245
    %v1254 = vmul.f32 %v1246, %v1246
    %v1255 = vmul.f32 %v1247, %v1247
    %v1256 = vmul.f32 %v1248, %v1248
    %v1257 = vmul.f32 %v1249, %v1249
    %v1258 = vmul.f32 %v1250, %v1250
    %v1259 = vmul.f32 %v1251, %v1251
    %v1260 = vsel %vm1178, %v1252, 0.0
    %v1261 = vrot.slane %v1260, 4
    %v1262 = vadd.f32 %v1260, %v1261
    %v1263 = vrot.slane %v1262, 2
    %v1264 = vadd.f32 %v1262, %v1263
    %v1265 = vrot.slane %v1264, 1
    %v1266 = vadd.f32 %v1264, %v1265
    %v1267 = vsel %vm1178, %v1253, 0.0
    %v1268 = vrot.slane %v1267, 4
    %v1269 = vadd.f32 %v1267, %v1268
    %v1270 = vrot.slane %v1269, 2
    %v1271 = vadd.f32 %v1269, %v1270
    %v1272 = vrot.slane %v1271, 1
    %v1273 = vadd.f32 %v1271, %v1272
    %v1274 = vsel %vm1178, %v1254, 0.0
    %v1275 = vrot.slane %v1274, 4
    %v1276 = vadd.f32 %v1274, %v1275
    %v1277 = vrot.slane %v1276, 2
    %v1278 = vadd.f32 %v1276, %v1277
    %v1279 = vrot.slane %v1278, 1
    %v1280 = vadd.f32 %v1278, %v1279
    %v1281 = vsel %vm1178, %v1255, 0.0
    %v1282 = vrot.slane %v1281, 4
    %v1283 = vadd.f32 %v1281, %v1282
    %v1284 = vrot.slane %v1283, 2
    %v1285 = vadd.f32 %v1283, %v1284
    %v1286 = vrot.slane %v1285, 1
    %v1287 = vadd.f32 %v1285, %v1286
    %v1288 = vsel %vm1178, %v1256, 0.0
    %v1289 = vrot.slane %v1288, 4
    %v1290 = vadd.f32 %v1288, %v1289
    %v1291 = vrot.slane %v1290, 2
    %v1292 = vadd.f32 %v1290, %v1291
    %v1293 = vrot.slane %v1292, 1
    %v1294 = vadd.f32 %v1292, %v1293
    %v1295 = vsel %vm1178, %v1257, 0.0
    %v1296 = vrot.slane %v1295, 4
    %v1297 = vadd.f32 %v1295, %v1296
    %v1298 = vrot.slane %v1297, 2
    %v1299 = vadd.f32 %v1297, %v1298
    %v1300 = vrot.slane %v1299, 1
    %v1301 = vadd.f32 %v1299, %v1300
    %v1302 = vsel %vm1178, %v1258, 0.0
    %v1303 = vrot.slane %v1302, 4
    %v1304 = vadd.f32 %v1302, %v1303
    %v1305 = vrot.slane %v1304, 2
    %v1306 = vadd.f32 %v1304, %v1305
    %v1307 = vrot.slane %v1306, 1
    %v1308 = vadd.f32 %v1306, %v1307
    %v1309 = vsel %vm1178, %v1259, 0.0
    %v1310 = vrot.slane %v1309, 4
    %v1311 = vadd.f32 %v1309, %v1310
    %v1312 = vrot.slane %v1311, 2
    %v1313 = vadd.f32 %v1311, %v1312
    %v1314 = vrot.slane %v1313, 1
    %v1315 = vadd.f32 %v1313, %v1314
    %v1316 = vmul.f32 %v1266, %v1235
    %v1317 = vmul.f32 %v1273, %v1235
    %v1318 = vmul.f32 %v1280, %v1235
    %v1319 = vmul.f32 %v1287, %v1235
    %v1320 = vmul.f32 %v1294, %v1235
    %v1321 = vmul.f32 %v1301, %v1235
    %v1322 = vmul.f32 %v1308, %v1235
    %v1323 = vmul.f32 %v1315, %v1235
    %v1324 = vadd.f32 %v1316, 1e-05
    %v1325 = vadd.f32 %v1317, 1e-05
    %v1326 = vadd.f32 %v1318, 1e-05
    %v1327 = vadd.f32 %v1319, 1e-05
    %v1328 = vadd.f32 %v1320, 1e-05
    %v1329 = vadd.f32 %v1321, 1e-05
    %v1330 = vadd.f32 %v1322, 1e-05
    %v1331 = vadd.f32 %v1323, 1e-05
    %v1332 = vrsqrt.pop %v1324
    %v1333 = vmul.f32 %v1324, %v1332
    %vm1334 = vcmp.eq.f32.partialorder %v1324, inf
    %v1335 = vsel %vm1334, %v1324, %v1333
    %vm1336 = vcmp.eq.f32.partialorder %v1324, 0.0
    %v1337 = vand.u32 %v1324, 2147483648
    %v1338 = vsel %vm1336, %v1337, %v1335
    %v1339 = vrsqrt.pop %v1325
    %v1340 = vmul.f32 %v1325, %v1339
    %vm1341 = vcmp.eq.f32.partialorder %v1325, inf
    %v1342 = vsel %vm1341, %v1325, %v1340
    %vm1343 = vcmp.eq.f32.partialorder %v1325, 0.0
    %v1344 = vand.u32 %v1325, 2147483648
    %v1345 = vsel %vm1343, %v1344, %v1342
    %v1346 = vrsqrt.pop %v1326
    %v1347 = vmul.f32 %v1326, %v1346
    %vm1348 = vcmp.eq.f32.partialorder %v1326, inf
    %v1349 = vsel %vm1348, %v1326, %v1347
    %vm1350 = vcmp.eq.f32.partialorder %v1326, 0.0
    %v1351 = vand.u32 %v1326, 2147483648
    %v1352 = vsel %vm1350, %v1351, %v1349
    %v1353 = vrsqrt.pop %v1327
    %v1354 = vmul.f32 %v1327, %v1353
    %vm1355 = vcmp.eq.f32.partialorder %v1327, inf
    %v1356 = vsel %vm1355, %v1327, %v1354
    %vm1357 = vcmp.eq.f32.partialorder %v1327, 0.0
    %v1358 = vand.u32 %v1327, 2147483648
    %v1359 = vsel %vm1357, %v1358, %v1356
    %v1360 = vrsqrt.pop %v1328
    %v1361 = vmul.f32 %v1328, %v1360
    %vm1362 = vcmp.eq.f32.partialorder %v1328, inf
    %v1363 = vsel %vm1362, %v1328, %v1361
    %vm1364 = vcmp.eq.f32.partialorder %v1328, 0.0
    %v1365 = vand.u32 %v1328, 2147483648
    %v1366 = vsel %vm1364, %v1365, %v1363
    %v1367 = vrsqrt.pop %v1329
    %v1368 = vmul.f32 %v1329, %v1367
    %vm1369 = vcmp.eq.f32.partialorder %v1329, inf
    %v1370 = vsel %vm1369, %v1329, %v1368
    %vm1371 = vcmp.eq.f32.partialorder %v1329, 0.0
    %v1372 = vand.u32 %v1329, 2147483648
    %v1373 = vsel %vm1371, %v1372, %v1370
    %v1374 = vrsqrt.pop %v1330
    %v1375 = vmul.f32 %v1330, %v1374
    %vm1376 = vcmp.eq.f32.partialorder %v1330, inf
    %v1377 = vsel %vm1376, %v1330, %v1375
    %vm1378 = vcmp.eq.f32.partialorder %v1330, 0.0
    %v1379 = vand.u32 %v1330, 2147483648
    %v1380 = vsel %vm1378, %v1379, %v1377
    %v1381 = vrsqrt.pop %v1331
    %v1382 = vmul.f32 %v1331, %v1381
    %vm1383 = vcmp.eq.f32.partialorder %v1331, inf
    %v1384 = vsel %vm1383, %v1331, %v1382
    %vm1385 = vcmp.eq.f32.partialorder %v1331, 0.0
    %v1386 = vand.u32 %v1331, 2147483648
    %v1387 = vsel %vm1385, %v1386, %v1384
    %v1388 = vrcp.pop %v1338
    %v1389 = vmul.f32 1.0, %v1388
    %v1390 = vrcp.pop %v1345
    %v1391 = vmul.f32 1.0, %v1390
    %v1392 = vrcp.pop %v1352
    %v1393 = vmul.f32 1.0, %v1392
    %v1394 = vrcp.pop %v1359
    %v1395 = vmul.f32 1.0, %v1394
    %v1396 = vrcp.pop %v1366
    %v1397 = vmul.f32 1.0, %v1396
    %v1398 = vrcp.pop %v1373
    %v1399 = vmul.f32 1.0, %v1398
    %v1400 = vrcp.pop %v1380
    %v1401 = vmul.f32 1.0, %v1400
    %v1402 = vrcp.pop %v1387
    %v1403 = vmul.f32 1.0, %v1402
    %v1404 = vld [vmem:[%s5] sm:$0x1]
    %v1405 = vld [vmem:[%s7] sm:$0xff]
    %v1407 = vlaneseq
    %v1408 = vshrl.u32 %v1407, 7
    %v1409 = vsub.s32 0, %v1408
    %v1410 = vrot.slane %v1404, %v1409
    %v1412 = vmul.f32 %v1410, %v1405
    %v1413 = vld [vmem:[%s6] sm:$0x1]
    %v1415 = vlaneseq
    %v1416 = vshrl.u32 %v1415, 7
    %v1417 = vsub.s32 0, %v1416
    %v1418 = vrot.slane %v1413, %v1417
    %v1420 = vmul.f32 %v1418, %v1405
    %v1421 = vmul.f32 %v1244, %v1389
    %v1422 = vmul.f32 %v1245, %v1391
    %v1423 = vmul.f32 %v1246, %v1393
    %v1424 = vmul.f32 %v1247, %v1395
    %v1425 = vmul.f32 %v1248, %v1397
    %v1426 = vmul.f32 %v1249, %v1399
    %v1427 = vmul.f32 %v1250, %v1401
    %v1428 = vmul.f32 %v1251, %v1403
    %1430 = vrot.lane.b32.xlu0 %v1412, 96
    %v1431 = vpop.permute.xlu0 %1430
    %v1433 = vmul.f32 %v1421, %v1431
    %v1434 = vmul.f32 %v1422, %v1431
    %v1435 = vmul.f32 %v1423, %v1431
    %v1436 = vmul.f32 %v1424, %v1431
    %v1437 = vmul.f32 %v1425, %v1431
    %v1438 = vmul.f32 %v1426, %v1431
    %v1439 = vmul.f32 %v1427, %v1431
    %v1440 = vmul.f32 %v1428, %v1431
    %1442 = vrot.lane.b32.xlu0 %v1420, 96
    %v1443 = vpop.permute.xlu0 %1442
    %v1445 = vadd.f32 %v1433, %v1443
    %v1446 = vadd.f32 %v1434, %v1443
    %v1447 = vadd.f32 %v1435, %v1443
    %v1448 = vadd.f32 %v1436, %v1443
    %v1449 = vadd.f32 %v1437, %v1443
    %v1450 = vadd.f32 %v1438, %v1443
    %v1451 = vadd.f32 %v1439, %v1443
    %v1452 = vadd.f32 %v1440, %v1443
    %v1453 = vsel %vm1178, %v1445, -inf
    %v1454 = vsel %vm1178, %v1446, -inf
    %v1455 = vsel %vm1178, %v1447, -inf
    %v1456 = vsel %vm1178, %v1448, -inf
    %v1457 = vsel %vm1178, %v1449, -inf
    %v1458 = vmax.f32 %v1453, %v1457
    %v1459 = vsel %vm1178, %v1450, -inf
    %v1460 = vmax.f32 %v1454, %v1459
    %v1461 = vsel %vm1178, %v1451, -inf
    %v1462 = vmax.f32 %v1455, %v1461
    %v1463 = vsel %vm1178, %v1452, -inf
    %v1464 = vmax.f32 %v1456, %v1463
    %v1465 = vmax.f32 %v1458, %v1460
    %v1466 = vmax.f32 %v1462, %v1464
    %v1467 = vmax.f32 %v1465, %v1466
    %v1468 = vld [vmem:[%s8] sm:$0x1]
    %v1469 = vld [vmem:[#allocation2] sm:$0x1]
    %1471 = vset.pattern.permute.xlu0 0
    %1472 = vperm.xlu0 %1471, %v1469
    %v1473 = vpop.permute.xlu0 %1472
    %v1475 = vlaneseq
    %v1476 = vshrl.u32 %v1475, 7
    %v1477 = vsub.s32 0, %v1476
    %v1478 = vrot.slane %v1473, %v1477
    %1480 = vrot.lane.b32.xlu0 %v1467, 32
    %v1481 = vpop.permute.xlu0 %1480
    %v1483 = vsel %vm113, %v1468, 0
    %v1485 = vsel %vm113, %v1481, 0
    %1487 = vmatprep.subr.mxu0 0.0
    %1488 = vmatpush1.xpose.msra.mxu0 %v1485
    %1489 = vmatprep.subr.mxu0 0.0
    %1490 = vmatpush1.xpose.msra.mxu0 0.0
    %1491 = vmatprep.subr.mxu0 0.0
    %1492 = vmatpush1.xpose.msra.mxu0 0.0
    %1493 = vmatprep.subr.mxu0 0.0
    %1494 = vmatpush1.xpose.msra.mxu0 0.0
    %1495 = vmatprep.subr.mxu0 0.0
    %1496 = vmatpush1.xpose.msra.mxu0 0.0
    %1497 = vmatprep.subr.mxu0 0.0
    %1498 = vmatpush1.xpose.msra.mxu0 0.0
    %1499 = vmatprep.subr.mxu0 0.0
    %1500 = vmatpush1.xpose.msra.mxu0 0.0
    %1501 = vmatprep.subr.mxu0 0.0
    %1502 = vmatpush1.xpose.msra.mxu0 0.0
    %1503 = vmatprep.subr.mxu0 0.0
    %1504 = vmatpush1.xpose.msra.mxu0 0.0
    %1505 = vmatprep.subr.mxu0 0.0
    %1506 = vmatpush1.xpose.msra.mxu0 0.0
    %1507 = vmatprep.subr.mxu0 0.0
    %1508 = vmatpush1.xpose.msra.mxu0 0.0
    %1509 = vmatprep.subr.mxu0 0.0
    %1510 = vmatpush1.xpose.msra.mxu0 0.0
    %1511 = vmatprep.subr.mxu0 0.0
    %1512 = vmatpush1.xpose.msra.mxu0 0.0
    %1513 = vmatprep.subr.mxu0 0.0
    %1514 = vmatpush1.xpose.msra.mxu0 0.0
    %1515 = vmatprep.subr.mxu0 0.0
    %1516 = vmatpush1.xpose.msra.mxu0 0.0
    %1517 = vmatprep.subr.mxu0 0.0
    %1518 = vmatpush1.xpose.msra.mxu0 0.0
    %1519 = vmatprep.subr.mxu0 0.0
    %1520 = vmatpush1.xpose.msra.mxu0 0.0
    %1521 = vmatprep.subr.mxu0 0.0
    %1522 = vmatpush1.xpose.msra.mxu0 0.0
    %1523 = vmatprep.subr.mxu0 0.0
    %1524 = vmatpush1.xpose.msra.mxu0 0.0
    %1525 = vmatprep.subr.mxu0 0.0
    %1526 = vmatpush1.xpose.msra.mxu0 0.0
    %1527 = vmatprep.subr.mxu0 0.0
    %1528 = vmatpush1.xpose.msra.mxu0 0.0
    %1529 = vmatprep.subr.mxu0 0.0
    %1530 = vmatpush1.xpose.msra.mxu0 0.0
    %1531 = vmatprep.subr.mxu0 0.0
    %1532 = vmatpush1.xpose.msra.mxu0 0.0
    %1533 = vmatprep.subr.mxu0 0.0
    %1534 = vmatpush1.xpose.msra.mxu0 0.0
    %1535 = vmatprep.subr.mxu0 0.0
    %1536 = vmatpush1.xpose.msra.mxu0 0.0
    %1537 = vmatprep.subr.mxu0 0.0
    %1538 = vmatpush1.xpose.msra.mxu0 0.0
    %1539 = vmatprep.subr.mxu0 0.0
    %1540 = vmatpush1.xpose.msra.mxu0 0.0
    %1541 = vmatprep.subr.mxu0 0.0
    %1542 = vmatpush1.xpose.msra.mxu0 0.0
    %1543 = vmatprep.subr.mxu0 0.0
    %1544 = vmatpush1.xpose.msra.mxu0 0.0
    %1545 = vmatprep.subr.mxu0 0.0
    %1546 = vmatpush1.xpose.msra.mxu0 0.0
    %1547 = vmatprep.subr.mxu0 0.0
    %1548 = vmatpush1.xpose.msra.mxu0 0.0
    %1549 = vmatprep.subr.mxu0 0.0
    %1550 = vmatpush1.xpose.msra.mxu0 0.0
    %1551 = vmatprep.mubr.f32.mxu0 0.0
    %1552 = vmatmul.mubr.f32.gmra.mrb[0].mxu0 %v1483
    %v1553 = vpop.f32.mrb[0].mxu0
    %v1554 = vadd.f32 %v1478, %v1553
    %v1555 = vpop.f32.mrb[0].mxu0
    %1556 = vdwg.mxu0
    %vm1557 = vcmask 57344
    %1558 = vst.msk [vmem:[#allocation5] sm:$0x1] %vm1557, %v1554
    %v1559 = vld [vmem:[%s10] sm:$0x1]
    %v1560 = vmax.f32 %v1554, 0.0
    %v1561 = vmul.f32 %v1554, %v1559
    %v1562 = vsub.f32 %v1560, %v1561
    %v1563 = vand.u32 2147483647, %v1554
    %v1564 = vsub.f32 0.0, %v1563
    %v1565 = vmul.f32 %v1564, 1.442695
    %v1566 = vpow.pop %v1565
    %v1567 = vadd.f32 %v1566, 1.0
    %v1568 = vlog2.pop %v1567
    %v1569 = vmul.f32 %v1568, 0.6931472
    %v1570 = vmul.f32 -0.5, %v1566
    %v1571 = vadd.f32 %v1570, 1.0
    %v1572 = vmul.f32 %v1571, %v1566
    %v1573 = vand.u32 2147483647, %v1566
    %vm1574 = vcmp.lt.f32.partialorder %v1573, 0.0004427343
    %v1575 = vsel %vm1574, %v1572, %v1569
    %v1576 = vadd.f32 %v1562, %v1575
    %v1577 = vsel %vm1557, %v1576, 0.0
    %1578 = vadd.xlane.f32.xlu0 %v1577
    %v1579 = vpop.xlane.xlu0 %1578
    %v1580 = vrot.slane %v1579, 4
    %v1581 = vadd.f32 %v1579, %v1580
    %v1582 = vrot.slane %v1581, 2
    %v1583 = vadd.f32 %v1581, %v1582
    %v1584 = vrot.slane %v1583, 1
    %v1585 = vadd.f32 %v1583, %v1584
    %s1586 = vtos %v1585
    %v1587 = vstv %s1586
    %v1588 = vmul.f32 %v1587, %v1235
    %vm1589 = vcmask 0
    %1590 = vst.msk [vmem:[#allocation3] sm:$0x1] %vm1589, %v1588
    // Predicated region
    $region46: #{sentiment_forward.1} parent=1 // pred_check
      _
    $region47: #{sentiment_forward.1} parent=1 // pred_check_branch
      %1592 = sbr.rel (0) target = $region49
    $region48: #{sentiment_forward.1} parent=1 // pred_region
      %s1594 = ssub.s32 16, 16
      %1595 = vsyncadd [#allocation4], %s1594
      %s1597 = sshll.u32 [#allocation3], 4
      %s1598 = int_to_ptr.vmem [resolvable:$true] %s1597
      %1600 = dma.vmem_to_hbm [thread:$0]  %s1598, 16, %s11, [#allocation4]
    $region49: #{sentiment_forward.1} parent=1 // pred_fallthru
      _
    // Predicated region
    $region50: #{sentiment_forward.1} parent=1 // pred_check
      _
    $region51: #{sentiment_forward.1} parent=1 // pred_check_branch
      %1602 = sbr.rel (0) target = $region53
    $region52: #{sentiment_forward.1} parent=1 // pred_region
      %s1604 = ssub.s32 16, 16
      %1605 = vsyncadd [#allocation6], %s1604
      %s1607 = sshll.u32 [#allocation5], 4
      %s1608 = int_to_ptr.vmem [resolvable:$true] %s1607
      %1610 = dma.vmem_to_hbm [thread:$0]  %s1608, 16, %s12, [#allocation6]
    $region53: #{sentiment_forward.1} parent=1 // pred_fallthru
      _
    // Predicated region
    $region54: #{sentiment_forward.1} parent=1 // pred_check
      _
    $region55: #{sentiment_forward.1} parent=1 // pred_check_branch
      %1612 = sbr.rel (0) target = $region57
    $region56: #{sentiment_forward.1} parent=1 // pred_region
      %1613 = dma.done [#allocation4], 16
    $region57: #{sentiment_forward.1} parent=1 // pred_fallthru
      _
    // Predicated region
    $region58: #{sentiment_forward.1} parent=1 // pred_check
      _
    $region59: #{sentiment_forward.1} parent=1 // pred_check_branch
      %1615 = sbr.rel (0) target = $region61
    $region60: #{sentiment_forward.1} parent=1 // pred_region
      %1616 = dma.done [#allocation6], 16
    $region61: #{sentiment_forward.1} parent=1 // pred_fallthru
      _
    %1617 = vsyncpa [#allocation4], 1
    %1618 = vsyncpa [#allocation6], 1

</llo_original>
